<compile_context>
chip_gen: v7x
topology: tpu7x:2x2x1
jax: 0.10.0
libtpu: 0.0.40
codegen_flags: <defaults>
</compile_context>

<pallas_src>
import functools

import jax
import jax.numpy as jnp
from jax.experimental import pallas as pl
from jax.experimental.pallas import tpu as pltpu


def _mlp_kernel(x_ref,
                w1_ref, b1_ref,
                w2_ref, b2_ref,
                w3_ref, b3_ref,
                w4_ref, b4_ref,
                o_ref):
    # x_ref: (8, tm) f32, batch on the lane axis. All layers compute W @ X.
    x = x_ref[...]                                                   # (8, tm) f32

    # fc1 in f32 (K=8, negligible FLOPs; preserves input precision).
    h1 = jnp.dot(w1_ref[...], x, preferred_element_type=jnp.float32) + b1_ref[...]
    h1 = jnp.maximum(h1, 0.0).astype(jnp.bfloat16)                   # (128, tm)

    h2 = jnp.dot(w2_ref[...], h1, preferred_element_type=jnp.float32) + b2_ref[...]
    h2 = jnp.maximum(h2, 0.0).astype(jnp.bfloat16)                   # (256, tm)

    h3 = jnp.dot(w3_ref[...], h2, preferred_element_type=jnp.float32) + b3_ref[...]
    h3 = jnp.maximum(h3, 0.0).astype(jnp.bfloat16)                   # (128, tm)

    out = jnp.dot(w4_ref[...], h3, preferred_element_type=jnp.float32) + b4_ref[...]
    o_ref[...] = out                                                 # (8, tm) f32


def prepare_params(params):
    """One-time (outside the hot path) layout/dtype prep.

    params: dict with w1..w4 stored [out, in] (PyTorch layout, f32) and
    b1..b4 stored [out] (f32).
    """
    w1 = jnp.pad(params["w1"].astype(jnp.float32), ((0, 0), (0, 2)))      # (128, 8) f32
    w4 = jnp.pad(params["w4"].astype(jnp.bfloat16), ((0, 5), (0, 0)))     # (8, 128) bf16
    b4 = jnp.pad(params["b4"].reshape(3, 1), ((0, 5), (0, 0)))            # (8, 1)
    return {
        "w1": w1,
        "b1": params["b1"].reshape(128, 1).astype(jnp.float32),
        "w2": params["w2"].astype(jnp.bfloat16),                          # (256, 128)
        "b2": params["b2"].reshape(256, 1).astype(jnp.float32),
        "w3": params["w3"].astype(jnp.bfloat16),                          # (128, 256)
        "b3": params["b3"].reshape(128, 1).astype(jnp.float32),
        "w4": w4,
        "b4": b4.astype(jnp.float32),
    }


def _pick_tm(batch):
    """>= ~4 grid steps when possible (v7x megacore), 256..4096, multiple of 256."""
    target = -(-batch // 4)
    tm = -(-target // 256) * 256
    return max(256, min(4096, tm))


def _vmem_limit_bytes(tm):
    # Double-buffered (8, tm) f32 input/output blocks.
    io = 2 * 2 * (8 * tm * 4)
    # Weights + biases (conservatively counted double-buffered).
    wsz = 2 * (128 * 8 * 4
               + (256 * 128 + 128 * 256 + 8 * 128) * 2
               + (128 + 256 + 128 + 8) * 4)
    # Materialized intermediates h1/h2/h3 in f32 and bf16.
    inter = tm * ((128 + 256 + 128) * 4 + (128 + 256 + 128) * 2)
    est = io + wsz + inter
    # 2x headroom, capped at 48 MiB so v7x (64 MiB/TC) keeps pipeline slack.
    return min(48 * 1024 * 1024, max(32 * 1024 * 1024, 2 * est))


@functools.partial(jax.jit, static_argnames=("tm",))
def light_probe_nn(hit_point, ray_dir, prepared, *, tm=None):
    """Forward pass of LightProbeNN.

    hit_point: [B, 3] float32
    ray_dir:   [B, 3] float32
    prepared:  output of prepare_params()
    returns:   [B, 3] float32
    """
    B = hit_point.shape[0]
    if tm is None:
        tm = _pick_tm(B)

    hit_point = hit_point.astype(jnp.float32)
    ray_dir = ray_dir.astype(jnp.float32)

    # Feature-major packed input: rows 0-2 hit_point, 3-5 ray_dir, 6-7 zeros.
    x_fm = jnp.concatenate(
        [hit_point.T, ray_dir.T, jnp.zeros((2, B), jnp.float32)], axis=0)  # (8, B)

    w1, b1 = prepared["w1"], prepared["b1"]
    w2, b2 = prepared["w2"], prepared["b2"]
    w3, b3 = prepared["w3"], prepared["b3"]
    w4, b4 = prepared["w4"], prepared["b4"]

    grid = (pl.cdiv(B, tm),)

    def const2d(arr):
        return pl.BlockSpec(arr.shape, lambda i: (0, 0))

    flops_per_col = 2 * (8 * 128 + 128 * 256 + 256 * 128 + 128 * 8)
    weight_bytes = (128 * 8 * 4
                    + (256 * 128 + 128 * 256 + 8 * 128) * 2
                    + (128 + 256 + 128 + 8) * 4)
    cost = pl.CostEstimate(
        flops=flops_per_col * B,
        transcendentals=0,
        bytes_accessed=B * (8 * 4 + 8 * 4) + weight_bytes,
    )

    out_fm = pl.pallas_call(
        _mlp_kernel,
        out_shape=jax.ShapeDtypeStruct((8, B), jnp.float32),
        grid_spec=pltpu.PrefetchScalarGridSpec(
            num_scalar_prefetch=0,
            grid=grid,
            in_specs=[
                pl.BlockSpec((8, tm), lambda i: (0, i)),   # packed input tile
                const2d(w1), const2d(b1),
                const2d(w2), const2d(b2),
                const2d(w3), const2d(b3),
                const2d(w4), const2d(b4),
            ],
            out_specs=pl.BlockSpec((8, tm), lambda i: (0, i)),
        ),
        compiler_params=pltpu.CompilerParams(
            dimension_semantics=("parallel",),
            vmem_limit_bytes=_vmem_limit_bytes(tm),
        ),
        cost_estimate=cost,
    )(x_fm, w1, b1, w2, b2, w3, b3, w4, b4)

    return out_fm[:3].T                                              # (B, 3) f32


def init_params(key):
    """Deterministic init mirroring nn.Linear's default U(-1/sqrt(fan_in), +).

    Weights stored [out, in] (PyTorch layout), biases [out].
    """
    dims = [(6, 128), (128, 256), (256, 128), (128, 3)]
    params = {}
    for idx, (fan_in, fan_out) in enumerate(dims, start=1):
        key, kw, kb = jax.random.split(key, 3)
        bound = 1.0 / (float(fan_in) ** 0.5)
        params[f"w{idx}"] = jax.random.uniform(
            kw, (fan_out, fan_in), jnp.float32, -bound, bound)
        params[f"b{idx}"] = jax.random.uniform(
            kb, (fan_out,), jnp.float32, -bound, bound)
    return params


def _reference_forward_mixed(hit_point, ray_dir, p):
    """Pure-JAX reference mirroring the kernel's f32-fc1 / bf16-rest precision."""
    x = jnp.concatenate([hit_point, ray_dir], axis=1).astype(jnp.float32)
    h = jnp.maximum(x @ p["w1"][:, :6].T + p["b1"][:, 0], 0.0)
    h = h.astype(jnp.bfloat16)
    h = jnp.dot(h, p["w2"].T, preferred_element_type=jnp.float32) + p["b2"][:, 0]
    h = jnp.maximum(h, 0.0).astype(jnp.bfloat16)
    h = jnp.dot(h, p["w3"].T, preferred_element_type=jnp.float32) + p["b3"][:, 0]
    h = jnp.maximum(h, 0.0).astype(jnp.bfloat16)
    return jnp.dot(h, p["w4"][:3].T, preferred_element_type=jnp.float32) + p["b4"][:3, 0]


def _reference_forward_f32(hit_point, ray_dir, params):
    """Full-precision reference of the original PyTorch module."""
    x = jnp.concatenate([hit_point, ray_dir], axis=1)
    x = jax.nn.relu(x @ params["w1"].T + params["b1"])
    x = jax.nn.relu(x @ params["w2"].T + params["b2"])
    x = jax.nn.relu(x @ params["w3"].T + params["b3"])
    return x @ params["w4"].T + params["b4"]


if __name__ == "__main__":
    key = jax.random.PRNGKey(0)
    kp, kh, kr = jax.random.split(key, 3)

    params = init_params(kp)
    prepared = prepare_params(params)

    # 300 rows: one full tile plus a masked ragged tail (grid length 2).
    B = 300
    hit_point = jax.random.normal(kh, (B, 3), jnp.float32)
    ray_dir = jax.random.normal(kr, (B, 3), jnp.float32)

    out = light_probe_nn(hit_point, ray_dir, prepared)
    out = jax.block_until_ready(out)
    assert out.shape == (B, 3)

    # Tight check vs. a reference using the same mixed precision.
    ref_mixed = _reference_forward_mixed(hit_point, ray_dir, prepared)
    assert jnp.allclose(out, ref_mixed, atol=1e-2, rtol=1e-2), \
        "mismatch vs mixed-precision reference"

    # Loose sanity check vs. the full-f32 PyTorch-equivalent forward.
    ref_f32 = _reference_forward_f32(hit_point, ray_dir, params)
    assert jnp.allclose(out, ref_f32, atol=1e-1, rtol=1e-1), \
        "mismatch vs f32 reference"

    print("KERNEL_OK")
</pallas_src>

<mosaic_0001>
module attributes {stable_mosaic.version = 11 : i64} {
  func.func @_mlp_kernel(%arg0: i32, %arg1: memref<8x256xf32, #tpu.memory_space<vmem>>, %arg2: memref<128x8xf32, #tpu.memory_space<vmem>>, %arg3: memref<128x1xf32, #tpu.memory_space<vmem>>, %arg4: memref<256x128xbf16, #tpu.memory_space<vmem>>, %arg5: memref<256x1xf32, #tpu.memory_space<vmem>>, %arg6: memref<128x256xbf16, #tpu.memory_space<vmem>>, %arg7: memref<128x1xf32, #tpu.memory_space<vmem>>, %arg8: memref<8x128xbf16, #tpu.memory_space<vmem>>, %arg9: memref<8x1xf32, #tpu.memory_space<vmem>>, %arg10: memref<8x256xf32, #tpu.memory_space<vmem>>) attributes {dimension_semantics = [#tpu.dimension_semantics<parallel>], iteration_bounds = array<i64: 2>, scalar_prefetch = 0 : i64, scratch_operands = 0 : i64, tpu.core_type = #tpu.core_type<tc>, window_params = [{transform_indices = @transform_0, window_bounds = array<i64: 8, 256>}, {pipeline_mode = #tpu.pipeline_mode<synchronous>, transform_indices = @transform_1, window_bounds = array<i64: 128, 8>}, {pipeline_mode = #tpu.pipeline_mode<synchronous>, transform_indices = @transform_2, window_bounds = array<i64: 128, 1>}, {pipeline_mode = #tpu.pipeline_mode<synchronous>, transform_indices = @transform_3, window_bounds = array<i64: 256, 128>}, {pipeline_mode = #tpu.pipeline_mode<synchronous>, transform_indices = @transform_4, window_bounds = array<i64: 256, 1>}, {pipeline_mode = #tpu.pipeline_mode<synchronous>, transform_indices = @transform_5, window_bounds = array<i64: 128, 256>}, {pipeline_mode = #tpu.pipeline_mode<synchronous>, transform_indices = @transform_6, window_bounds = array<i64: 128, 1>}, {pipeline_mode = #tpu.pipeline_mode<synchronous>, transform_indices = @transform_7, window_bounds = array<i64: 8, 128>}, {pipeline_mode = #tpu.pipeline_mode<synchronous>, transform_indices = @transform_8, window_bounds = array<i64: 8, 1>}, {transform_indices = @transform_9, window_bounds = array<i64: 8, 256>}]} {
    %c0 = arith.constant 0 : index
    %c0_0 = arith.constant 0 : index
    %0 = vector.load %arg1[%c0, %c0_0] : memref<8x256xf32, #tpu.memory_space<vmem>>, vector<8x256xf32>
    %c0_1 = arith.constant 0 : index
    %c0_2 = arith.constant 0 : index
    %1 = vector.load %arg2[%c0_1, %c0_2] : memref<128x8xf32, #tpu.memory_space<vmem>>, vector<128x8xf32>
    %cst = arith.constant dense<0.000000e+00> : vector<128x256xf32>
    %2 = tpu.matmul %1, %0, %cst {dimension_numbers = #tpu.dot_dimension_numbers<[1], [0], [0], [1], [0, 0, 1, 1], [], []>} : vector<128x8xf32>, vector<8x256xf32>, vector<128x256xf32> -> vector<128x256xf32>
    %c0_3 = arith.constant 0 : index
    %c0_4 = arith.constant 0 : index
    %3 = vector.load %arg3[%c0_3, %c0_4] : memref<128x1xf32, #tpu.memory_space<vmem>>, vector<128x1xf32>
    %4 = vector.broadcast %3 : vector<128x1xf32> to vector<128x256xf32>
    %5 = arith.addf %2, %4 : vector<128x256xf32>
    %cst_5 = arith.constant 0.000000e+00 : f32
    %6 = vector.broadcast %cst_5 : f32 to vector<128x256xf32>
    %7 = arith.maximumf %5, %6 : vector<128x256xf32>
    %8 = arith.truncf %7 : vector<128x256xf32> to vector<128x256xbf16>
    %c0_6 = arith.constant 0 : index
    %c0_7 = arith.constant 0 : index
    %9 = vector.load %arg4[%c0_6, %c0_7] : memref<256x128xbf16, #tpu.memory_space<vmem>>, vector<256x128xbf16>
    %cst_8 = arith.constant dense<0.000000e+00> : vector<256x256xf32>
    %10 = tpu.matmul %9, %8, %cst_8 {dimension_numbers = #tpu.dot_dimension_numbers<[1], [0], [0], [1], [0, 0, 1, 1], [], []>} : vector<256x128xbf16>, vector<128x256xbf16>, vector<256x256xf32> -> vector<256x256xf32>
    %c0_9 = arith.constant 0 : index
    %c0_10 = arith.constant 0 : index
    %11 = vector.load %arg5[%c0_9, %c0_10] : memref<256x1xf32, #tpu.memory_space<vmem>>, vector<256x1xf32>
    %12 = vector.broadcast %11 : vector<256x1xf32> to vector<256x256xf32>
    %13 = arith.addf %10, %12 : vector<256x256xf32>
    %cst_11 = arith.constant 0.000000e+00 : f32
    %14 = vector.broadcast %cst_11 : f32 to vector<256x256xf32>
    %15 = arith.maximumf %13, %14 : vector<256x256xf32>
    %16 = arith.truncf %15 : vector<256x256xf32> to vector<256x256xbf16>
    %c0_12 = arith.constant 0 : index
    %c0_13 = arith.constant 0 : index
    %17 = vector.load %arg6[%c0_12, %c0_13] : memref<128x256xbf16, #tpu.memory_space<vmem>>, vector<128x256xbf16>
    %cst_14 = arith.constant dense<0.000000e+00> : vector<128x256xf32>
    %18 = tpu.matmul %17, %16, %cst_14 {dimension_numbers = #tpu.dot_dimension_numbers<[1], [0], [0], [1], [0, 0, 1, 1], [], []>} : vector<128x256xbf16>, vector<256x256xbf16>, vector<128x256xf32> -> vector<128x256xf32>
    %c0_15 = arith.constant 0 : index
    %c0_16 = arith.constant 0 : index
    %19 = vector.load %arg7[%c0_15, %c0_16] : memref<128x1xf32, #tpu.memory_space<vmem>>, vector<128x1xf32>
    %20 = vector.broadcast %19 : vector<128x1xf32> to vector<128x256xf32>
    %21 = arith.addf %18, %20 : vector<128x256xf32>
    %cst_17 = arith.constant 0.000000e+00 : f32
    %22 = vector.broadcast %cst_17 : f32 to vector<128x256xf32>
    %23 = arith.maximumf %21, %22 : vector<128x256xf32>
    %24 = arith.truncf %23 : vector<128x256xf32> to vector<128x256xbf16>
    %c0_18 = arith.constant 0 : index
    %c0_19 = arith.constant 0 : index
    %25 = vector.load %arg8[%c0_18, %c0_19] : memref<8x128xbf16, #tpu.memory_space<vmem>>, vector<8x128xbf16>
    %cst_20 = arith.constant dense<0.000000e+00> : vector<8x256xf32>
    %26 = tpu.matmul %25, %24, %cst_20 {dimension_numbers = #tpu.dot_dimension_numbers<[1], [0], [0], [1], [0, 0, 1, 1], [], []>} : vector<8x128xbf16>, vector<128x256xbf16>, vector<8x256xf32> -> vector<8x256xf32>
    %c0_21 = arith.constant 0 : index
    %c0_22 = arith.constant 0 : index
    %27 = vector.load %arg9[%c0_21, %c0_22] : memref<8x1xf32, #tpu.memory_space<vmem>>, vector<8x1xf32>
    %28 = vector.broadcast %27 : vector<8x1xf32> to vector<8x256xf32>
    %29 = arith.addf %26, %28 : vector<8x256xf32>
    %c0_23 = arith.constant 0 : index
    %c0_24 = arith.constant 0 : index
    %30 = vector.load %arg10[%c0_23, %c0_24] : memref<8x256xf32, #tpu.memory_space<vmem>>, vector<8x256xf32>
    tpu.vector_store %arg10[%c0_23, %c0_24], %29 {strides = array<i32>} : memref<8x256xf32, #tpu.memory_space<vmem>>, vector<8x256xf32>,
    return
  }
  func.func @transform_0(%arg0: i32) -> (i32, i32) {
    %c0_i32 = arith.constant 0 : i32
    %c0_i32_0 = arith.constant 0 : i32
    return %c0_i32, %arg0 : i32, i32
  }
  func.func @transform_1(%arg0: i32) -> (i32, i32) {
    %c0_i32 = arith.constant 0 : i32
    %c0_i32_0 = arith.constant 0 : i32
    %c0_i32_1 = arith.constant 0 : i32
    return %c0_i32, %c0_i32_0 : i32, i32
  }
  func.func @transform_2(%arg0: i32) -> (i32, i32) {
    %c0_i32 = arith.constant 0 : i32
    %c0_i32_0 = arith.constant 0 : i32
    %c0_i32_1 = arith.constant 0 : i32
    return %c0_i32, %c0_i32_0 : i32, i32
  }
  func.func @transform_3(%arg0: i32) -> (i32, i32) {
    %c0_i32 = arith.constant 0 : i32
    %c0_i32_0 = arith.constant 0 : i32
    %c0_i32_1 = arith.constant 0 : i32
    return %c0_i32, %c0_i32_0 : i32, i32
  }
  func.func @transform_4(%arg0: i32) -> (i32, i32) {
    %c0_i32 = arith.constant 0 : i32
    %c0_i32_0 = arith.constant 0 : i32
    %c0_i32_1 = arith.constant 0 : i32
    return %c0_i32, %c0_i32_0 : i32, i32
  }
  func.func @transform_5(%arg0: i32) -> (i32, i32) {
    %c0_i32 = arith.constant 0 : i32
    %c0_i32_0 = arith.constant 0 : i32
    %c0_i32_1 = arith.constant 0 : i32
    return %c0_i32, %c0_i32_0 : i32, i32
  }
  func.func @transform_6(%arg0: i32) -> (i32, i32) {
    %c0_i32 = arith.constant 0 : i32
    %c0_i32_0 = arith.constant 0 : i32
    %c0_i32_1 = arith.constant 0 : i32
    return %c0_i32, %c0_i32_0 : i32, i32
  }
  func.func @transform_7(%arg0: i32) -> (i32, i32) {
    %c0_i32 = arith.constant 0 : i32
    %c0_i32_0 = arith.constant 0 : i32
    %c0_i32_1 = arith.constant 0 : i32
    return %c0_i32, %c0_i32_0 : i32, i32
  }
  func.func @transform_8(%arg0: i32) -> (i32, i32) {
    %c0_i32 = arith.constant 0 : i32
    %c0_i32_0 = arith.constant 0 : i32
    %c0_i32_1 = arith.constant 0 : i32
    return %c0_i32, %c0_i32_0 : i32, i32
  }
  func.func @transform_9(%arg0: i32) -> (i32, i32) {
    %c0_i32 = arith.constant 0 : i32
    %c0_i32_0 = arith.constant 0 : i32
    return %c0_i32, %arg0 : i32, i32
  }
}

</mosaic_0001>

<llo_original>
// kernel: light_probe_nn.1
$region0: #{light_probe_nn.1}
  #allocation0 [shape = 'u32[]', space=smem, size = 0x4, offset = 0x4, fixed_abs, tag = 'smem constant byte address 0x4 - core index']
  #allocation1 [shape = 'u32[144,128]{1,0:T(1,128)}', space=vmem, size = 0x12000, scoped, tag = 'internal scratch']
  %s0 = inlined_call_operand.vmem [shape: f32[8,300], index: 0, kind: input, shape index: {}]
  %s1 = inlined_call_operand.vmem [shape: f32[128,8], index: 1, kind: input, shape index: {}]
  %s2 = inlined_call_operand.vmem [shape: f32[128,1], index: 2, kind: input, shape index: {}]
  %s3 = inlined_call_operand.vmem [shape: bf16[256,128], index: 3, kind: input, shape index: {}]
  %s4 = inlined_call_operand.vmem [shape: f32[256,1], index: 4, kind: input, shape index: {}]
  %s5 = inlined_call_operand.vmem [shape: bf16[128,256], index: 5, kind: input, shape index: {}]
  %s6 = inlined_call_operand.vmem [shape: f32[128,1], index: 6, kind: input, shape index: {}]
  %s7 = inlined_call_operand.vmem [shape: bf16[8,128], index: 7, kind: input, shape index: {}]
  %s8 = inlined_call_operand.vmem [shape: f32[8,1], index: 8, kind: input, shape index: {}]
  %s9 = inlined_call_operand.vmem [shape: f32[8,300], index: 9, kind: output, shape index: {}]
  %s10 = sld [smem:[#allocation0]]
  $region131: #{light_probe_nn.1} parent=0
    _
  %s12 = ssub.s32 1, %s10
  %s13 = scalar_select 0, %s12, %s10
  $region1: #{light_probe_nn.1} parent=0
    #allocation2 [shape = 'u8[16384]{0}', space=vmem, size = 0x4000, scoped, tag = 'output window, operand 0']
    loop: start=0, step=1, limit=4
    $region2: #{light_probe_nn.1} parent=1 // loop_pre_header
      _
    $region3: #{light_probe_nn.1} parent=1 // loop_header
      %s15 = sphi 0, %s19
      %p16 = scmp.ge.s32.totalorder %s15, 4
      %s25 = sphi 0, %s27
      %s28 = sphi 0, %s25
      %s29 = sphi 0, %s28
      %s45 = sphi 0, %s29
      %s49 = sphi 0, %s49
      %s51 = sphi 0, %s49
      %s52 = sphi 0, %s51
      %s66 = sphi 0, %s52
      %s70 = sphi 0, %s70
      %s72 = sphi 0, %s70
      %s73 = sphi 0, %s72
      %s87 = sphi 0, %s73
      %s91 = sphi 0, %s91
      %s93 = sphi 0, %s91
      %s94 = sphi 0, %s93
      %s108 = sphi 0, %s94
      %s112 = sphi 0, %s112
      %s114 = sphi 0, %s112
      %s115 = sphi 0, %s114
      %s129 = sphi 0, %s115
      %s133 = sphi 0, %s133
      %s135 = sphi 0, %s133
      %s136 = sphi 0, %s135
      %s150 = sphi 0, %s136
      %s154 = sphi 0, %s154
      %s156 = sphi 0, %s154
      %s157 = sphi 0, %s156
      %s171 = sphi 0, %s157
      %s175 = sphi 0, %s175
      %s177 = sphi 0, %s175
      %s178 = sphi 0, %s177
      %s192 = sphi 0, %s178
      %s196 = sphi 0, %s196
      %s198 = sphi 0, %s196
      %s199 = sphi 0, %s198
      %s213 = sphi 0, %s199
      %s219 = sphi 0, %s221
      %s222 = sphi 0, %s219
      %s223 = sphi 0, %s222
      %s239 = sphi 0, %s223
    $region4: #{light_probe_nn.1} parent=1 // loop_header_branch
      %18 = sbr.rel (%p16) target = $region8
    $region5: #{light_probe_nn.1} parent=1 // loop_body
      %s20 = ssub.s32 %s15, 1
      %s21 = ssub.s32 %s15, 2
      %s22 = sadd.s32 %s15, 1
      %s23 = ssub.s32 %s15, %s22
      %p24 = scmp.eq.s32.totalorder %s23, 0
      %s26 = sadd.s32 %s25, 1
      %s27 = scalar_select %p24, %s25, %s26
      %p30 = pneg %p24
      %p31 = scmp.eq.s32.totalorder %s15, 1
      %p32 = por %p30, %p31
      %p33 = scmp.ne.s32.totalorder %s25, %s28
      %p34 = scmp.eq.s32.totalorder %s15, 0
      %p35 = por %p33, %p34
      %p36 = scmp.ne.s32.totalorder %s25, %s28
      %p37 = scmp.eq.s32.totalorder %s20, 1
      %p38 = por %p36, %p37
      %p39 = scmp.ne.s32.totalorder %s28, %s29
      %p40 = scmp.eq.s32.totalorder %s20, 0
      %p41 = por %p39, %p40
      %p42 = scmp.ne.s32.totalorder %s28, %s29
      %p43 = scmp.eq.s32.totalorder %s21, 1
      %p44 = por %p42, %p43
      %p46 = scmp.ne.s32.totalorder %s29, %s45
      %p47 = scmp.eq.s32.totalorder %s21, 0
      %p48 = por %p46, %p47
      %s50 = sadd.s32 %s49, 1
      %p53 = scmp.eq.s32.totalorder %s15, 1
      %p54 = scmp.ne.s32.totalorder %s49, %s51
      %p55 = scmp.eq.s32.totalorder %s15, 0
      %p56 = por %p54, %p55
      %p57 = scmp.ne.s32.totalorder %s49, %s51
      %p58 = scmp.eq.s32.totalorder %s20, 1
      %p59 = por %p57, %p58
      %p60 = scmp.ne.s32.totalorder %s51, %s52
      %p61 = scmp.eq.s32.totalorder %s20, 0
      %p62 = por %p60, %p61
      %p63 = scmp.ne.s32.totalorder %s51, %s52
      %p64 = scmp.eq.s32.totalorder %s21, 1
      %p65 = por %p63, %p64
      %p67 = scmp.ne.s32.totalorder %s52, %s66
      %p68 = scmp.eq.s32.totalorder %s21, 0
      %p69 = por %p67, %p68
      %s71 = sadd.s32 %s70, 1
      %p74 = scmp.eq.s32.totalorder %s15, 1
      %p75 = scmp.ne.s32.totalorder %s70, %s72
      %p76 = scmp.eq.s32.totalorder %s15, 0
      %p77 = por %p75, %p76
      %p78 = scmp.ne.s32.totalorder %s70, %s72
      %p79 = scmp.eq.s32.totalorder %s20, 1
      %p80 = por %p78, %p79
      %p81 = scmp.ne.s32.totalorder %s72, %s73
      %p82 = scmp.eq.s32.totalorder %s20, 0
      %p83 = por %p81, %p82
      %p84 = scmp.ne.s32.totalorder %s72, %s73
      %p85 = scmp.eq.s32.totalorder %s21, 1
      %p86 = por %p84, %p85
      %p88 = scmp.ne.s32.totalorder %s73, %s87
      %p89 = scmp.eq.s32.totalorder %s21, 0
      %p90 = por %p88, %p89
      %s92 = sadd.s32 %s91, 1
      %p95 = scmp.eq.s32.totalorder %s15, 1
      %p96 = scmp.ne.s32.totalorder %s91, %s93
      %p97 = scmp.eq.s32.totalorder %s15, 0
      %p98 = por %p96, %p97
      %p99 = scmp.ne.s32.totalorder %s91, %s93
      %p100 = scmp.eq.s32.totalorder %s20, 1
      %p101 = por %p99, %p100
      %p102 = scmp.ne.s32.totalorder %s93, %s94
      %p103 = scmp.eq.s32.totalorder %s20, 0
      %p104 = por %p102, %p103
      %p105 = scmp.ne.s32.totalorder %s93, %s94
      %p106 = scmp.eq.s32.totalorder %s21, 1
      %p107 = por %p105, %p106
      %p109 = scmp.ne.s32.totalorder %s94, %s108
      %p110 = scmp.eq.s32.totalorder %s21, 0
      %p111 = por %p109, %p110
      %s113 = sadd.s32 %s112, 1
      %p116 = scmp.eq.s32.totalorder %s15, 1
      %p117 = scmp.ne.s32.totalorder %s112, %s114
      %p118 = scmp.eq.s32.totalorder %s15, 0
      %p119 = por %p117, %p118
      %p120 = scmp.ne.s32.totalorder %s112, %s114
      %p121 = scmp.eq.s32.totalorder %s20, 1
      %p122 = por %p120, %p121
      %p123 = scmp.ne.s32.totalorder %s114, %s115
      %p124 = scmp.eq.s32.totalorder %s20, 0
      %p125 = por %p123, %p124
      %p126 = scmp.ne.s32.totalorder %s114, %s115
      %p127 = scmp.eq.s32.totalorder %s21, 1
      %p128 = por %p126, %p127
      %p130 = scmp.ne.s32.totalorder %s115, %s129
      %p131 = scmp.eq.s32.totalorder %s21, 0
      %p132 = por %p130, %p131
      %s134 = sadd.s32 %s133, 1
      %p137 = scmp.eq.s32.totalorder %s15, 1
      %p138 = scmp.ne.s32.totalorder %s133, %s135
      %p139 = scmp.eq.s32.totalorder %s15, 0
      %p140 = por %p138, %p139
      %p141 = scmp.ne.s32.totalorder %s133, %s135
      %p142 = scmp.eq.s32.totalorder %s20, 1
      %p143 = por %p141, %p142
      %p144 = scmp.ne.s32.totalorder %s135, %s136
      %p145 = scmp.eq.s32.totalorder %s20, 0
      %p146 = por %p144, %p145
      %p147 = scmp.ne.s32.totalorder %s135, %s136
      %p148 = scmp.eq.s32.totalorder %s21, 1
      %p149 = por %p147, %p148
      %p151 = scmp.ne.s32.totalorder %s136, %s150
      %p152 = scmp.eq.s32.totalorder %s21, 0
      %p153 = por %p151, %p152
      %s155 = sadd.s32 %s154, 1
      %p158 = scmp.eq.s32.totalorder %s15, 1
      %p159 = scmp.ne.s32.totalorder %s154, %s156
      %p160 = scmp.eq.s32.totalorder %s15, 0
      %p161 = por %p159, %p160
      %p162 = scmp.ne.s32.totalorder %s154, %s156
      %p163 = scmp.eq.s32.totalorder %s20, 1
      %p164 = por %p162, %p163
      %p165 = scmp.ne.s32.totalorder %s156, %s157
      %p166 = scmp.eq.s32.totalorder %s20, 0
      %p167 = por %p165, %p166
      %p168 = scmp.ne.s32.totalorder %s156, %s157
      %p169 = scmp.eq.s32.totalorder %s21, 1
      %p170 = por %p168, %p169
      %p172 = scmp.ne.s32.totalorder %s157, %s171
      %p173 = scmp.eq.s32.totalorder %s21, 0
      %p174 = por %p172, %p173
      %s176 = sadd.s32 %s175, 1
      %p179 = scmp.eq.s32.totalorder %s15, 1
      %p180 = scmp.ne.s32.totalorder %s175, %s177
      %p181 = scmp.eq.s32.totalorder %s15, 0
      %p182 = por %p180, %p181
      %p183 = scmp.ne.s32.totalorder %s175, %s177
      %p184 = scmp.eq.s32.totalorder %s20, 1
      %p185 = por %p183, %p184
      %p186 = scmp.ne.s32.totalorder %s177, %s178
      %p187 = scmp.eq.s32.totalorder %s20, 0
      %p188 = por %p186, %p187
      %p189 = scmp.ne.s32.totalorder %s177, %s178
      %p190 = scmp.eq.s32.totalorder %s21, 1
      %p191 = por %p189, %p190
      %p193 = scmp.ne.s32.totalorder %s178, %s192
      %p194 = scmp.eq.s32.totalorder %s21, 0
      %p195 = por %p193, %p194
      %s197 = sadd.s32 %s196, 1
      %p200 = scmp.eq.s32.totalorder %s15, 1
      %p201 = scmp.ne.s32.totalorder %s196, %s198
      %p202 = scmp.eq.s32.totalorder %s15, 0
      %p203 = por %p201, %p202
      %p204 = scmp.ne.s32.totalorder %s196, %s198
      %p205 = scmp.eq.s32.totalorder %s20, 1
      %p206 = por %p204, %p205
      %p207 = scmp.ne.s32.totalorder %s198, %s199
      %p208 = scmp.eq.s32.totalorder %s20, 0
      %p209 = por %p207, %p208
      %p210 = scmp.ne.s32.totalorder %s198, %s199
      %p211 = scmp.eq.s32.totalorder %s21, 1
      %p212 = por %p210, %p211
      %p214 = scmp.ne.s32.totalorder %s199, %s213
      %p215 = scmp.eq.s32.totalorder %s21, 0
      %p216 = por %p214, %p215
      %s217 = ssub.s32 %s15, %s22
      %p218 = scmp.eq.s32.totalorder %s217, 0
      %s220 = sadd.s32 %s219, 1
      %s221 = scalar_select %p218, %s219, %s220
      %p224 = pneg %p218
      %p225 = scmp.eq.s32.totalorder %s15, 1
      %p226 = por %p224, %p225
      %p227 = scmp.ne.s32.totalorder %s219, %s222
      %p228 = scmp.eq.s32.totalorder %s15, 0
      %p229 = por %p227, %p228
      %p230 = scmp.ne.s32.totalorder %s219, %s222
      %p231 = scmp.eq.s32.totalorder %s20, 1
      %p232 = por %p230, %p231
      %p233 = scmp.ne.s32.totalorder %s222, %s223
      %p234 = scmp.eq.s32.totalorder %s20, 0
      %p235 = por %p233, %p234
      %p236 = scmp.ne.s32.totalorder %s222, %s223
      %p237 = scmp.eq.s32.totalorder %s21, 1
      %p238 = por %p236, %p237
      %p240 = scmp.ne.s32.totalorder %s223, %s239
      %p241 = scmp.eq.s32.totalorder %s21, 0
      %p242 = por %p240, %p241
      %p243 = scmp.le.s32.totalorder 1, %s15
      %p244 = scmp.lt.s32.totalorder %s15, 3
      %p245 = pnand %p243, %p244
      %p246 = pneg %p245
      // Predicated region
      $region9: #{light_probe_nn.1} parent=5 // pred_check
        _
      $region10: #{light_probe_nn.1} parent=5 // pred_check_branch
        %248 = sbr.rel (%p245) target = $region12
      $region11: #{light_probe_nn.1} parent=5 // pred_region
        %s249 = ssub.s32 %s15, 1
        // Predicated region
        $region13: #{light_probe_nn.1} parent=11 // pred_check
          %p250 = pneg %p62
        $region14: #{light_probe_nn.1} parent=11 // pred_check_branch
          %252 = sbr.rel (%p250) target = $region16
        $region15: #{light_probe_nn.1} parent=11 // pred_region
          _
        $region16: #{light_probe_nn.1} parent=11 // pred_fallthru
          _
        // Predicated region
        $region17: #{light_probe_nn.1} parent=11 // pred_check
          %p253 = pneg %p83
        $region18: #{light_probe_nn.1} parent=11 // pred_check_branch
          %255 = sbr.rel (%p253) target = $region20
        $region19: #{light_probe_nn.1} parent=11 // pred_region
          _
        $region20: #{light_probe_nn.1} parent=11 // pred_fallthru
          _
        // Predicated region
        $region21: #{light_probe_nn.1} parent=11 // pred_check
          %p256 = pneg %p104
        $region22: #{light_probe_nn.1} parent=11 // pred_check_branch
          %258 = sbr.rel (%p256) target = $region24
        $region23: #{light_probe_nn.1} parent=11 // pred_region
          _
        $region24: #{light_probe_nn.1} parent=11 // pred_fallthru
          _
        // Predicated region
        $region25: #{light_probe_nn.1} parent=11 // pred_check
          %p259 = pneg %p125
        $region26: #{light_probe_nn.1} parent=11 // pred_check_branch
          %261 = sbr.rel (%p259) target = $region28
        $region27: #{light_probe_nn.1} parent=11 // pred_region
          _
        $region28: #{light_probe_nn.1} parent=11 // pred_fallthru
          _
        // Predicated region
        $region29: #{light_probe_nn.1} parent=11 // pred_check
          %p262 = pneg %p146
        $region30: #{light_probe_nn.1} parent=11 // pred_check_branch
          %264 = sbr.rel (%p262) target = $region32
        $region31: #{light_probe_nn.1} parent=11 // pred_region
          _
        $region32: #{light_probe_nn.1} parent=11 // pred_fallthru
          _
        // Predicated region
        $region33: #{light_probe_nn.1} parent=11 // pred_check
          %p265 = pneg %p167
        $region34: #{light_probe_nn.1} parent=11 // pred_check_branch
          %267 = sbr.rel (%p265) target = $region36
        $region35: #{light_probe_nn.1} parent=11 // pred_region
          _
        $region36: #{light_probe_nn.1} parent=11 // pred_fallthru
          _
        // Predicated region
        $region37: #{light_probe_nn.1} parent=11 // pred_check
          %p268 = pneg %p188
        $region38: #{light_probe_nn.1} parent=11 // pred_check_branch
          %270 = sbr.rel (%p268) target = $region40
        $region39: #{light_probe_nn.1} parent=11 // pred_region
          _
        $region40: #{light_probe_nn.1} parent=11 // pred_fallthru
          _
        // Predicated region
        $region41: #{light_probe_nn.1} parent=11 // pred_check
          %p271 = pneg %p209
        $region42: #{light_probe_nn.1} parent=11 // pred_check_branch
          %273 = sbr.rel (%p271) target = $region44
        $region43: #{light_probe_nn.1} parent=11 // pred_region
          _
        $region44: #{light_probe_nn.1} parent=11 // pred_fallthru
          _
      $region12: #{light_probe_nn.1} parent=5 // pred_fallthru
        _
      %p274 = scmp.lt.s32.totalorder %s15, 2
      // Predicated region
      $region45: #{light_probe_nn.1} parent=5 // pred_check
        %p275 = pneg %p274
      $region46: #{light_probe_nn.1} parent=5 // pred_check_branch
        %277 = sbr.rel (%p275) target = $region48
      $region47: #{light_probe_nn.1} parent=5 // pred_region
        // Predicated region
        $region49: #{light_probe_nn.1} parent=47 // pred_check
          %p278 = pneg %p35
        $region50: #{light_probe_nn.1} parent=47 // pred_check_branch
          %280 = sbr.rel (%p278) target = $region52
        $region51: #{light_probe_nn.1} parent=47 // pred_region
          %s281 = smul.u32 2, %s15
          %s282 = ssub.s32 3, %s281
          %p283 = scmp.lt.s32.totalorder %s282, 2
          %s284 = scalar_select %p283, %s282, 2
          %s285 = smul.u32 128, %s284
          %p286 = scmp.lt.s32.totalorder %s281, 2
          %s287 = scalar_select %p286, %s281, 2
          %s288 = smul.addr %s287, 8
          %s289 = scalar_lea.vmem %s0, %s288
          %s290 = smul.u32 2, %s15
          %s291 = ssub.s32 3, %s290
          %p292 = scmp.lt.s32.totalorder %s291, 2
          %s293 = scalar_select %p292, %s291, 2
          %s294 = smul.u32 128, %s293
        $region52: #{light_probe_nn.1} parent=47 // pred_fallthru
          _
      $region48: #{light_probe_nn.1} parent=5 // pred_fallthru
        _
      %p295 = scmp.le.s32.totalorder 1, %s15
      %p296 = scmp.lt.s32.totalorder %s15, 3
      %p297 = pnand %p295, %p296
      %p298 = pneg %p297
      // Predicated region
      $region53: #{light_probe_nn.1} parent=5 // pred_check
        _
      $region54: #{light_probe_nn.1} parent=5 // pred_check_branch
        %300 = sbr.rel (%p297) target = $region56
      $region55: #{light_probe_nn.1} parent=5 // pred_region
        %s301 = ssub.s32 %s15, 1
        %s302 = smul.u32 2, %s20
        %s303 = ssub.s32 3, %s302
        %p304 = scmp.lt.s32.totalorder %s303, 2
        %s305 = scalar_select %p304, %s303, 2
        %s306 = smul.u32 128, %s305
        %p307 = scmp.lt.s32.totalorder %s302, 2
        %s308 = scalar_select %p307, %s302, 2
        %s309 = smul.addr %s308, 8
        %s310 = scalar_lea.vmem %s0, %s309
        %p311 = pneg %p41
        %p312 = pneg %p38
        %p313 = pneg %p62
        %p314 = pneg %p59
        %p315 = pneg %p83
        %p316 = pneg %p80
        %p317 = pneg %p104
        %p318 = pneg %p101
        %p319 = pneg %p125
        %p320 = pneg %p122
        %p321 = pneg %p146
        %p322 = pneg %p143
        %p323 = pneg %p167
        %p324 = pneg %p164
        %p325 = pneg %p188
        %p326 = pneg %p185
        %p327 = pneg %p209
        %p328 = pneg %p206
        %p329 = pneg %p235
        %p330 = pneg %p232
        %s331 = sand.u32 %s222, 1
        %s332 = sand.u32 %s222, 1
        %s333 = smul.addr %s332, 16
        %s334 = scalar_lea.vmem [#allocation2], %s333
        %s335 = smul.u32 2, %s20
        %s336 = ssub.s32 3, %s335
        %p337 = scmp.lt.s32.totalorder %s336, 2
        %s338 = scalar_select %p337, %s336, 2
        %s339 = smul.u32 128, %s338
        %p340 = scmp.lt.s32.totalorder %s335, 2
        %s341 = scalar_select %p340, %s335, 2
        %s342 = smul.addr %s341, 8
        %s343 = scalar_lea.vmem %s0, %s342
        %s344 = smul.u32 2, %s20
        %s345 = ssub.s32 3, %s344
        %p346 = scmp.lt.s32.totalorder %s345, 2
        %s347 = scalar_select %p346, %s345, 2
        %s348 = smul.u32 128, %s347
        %s349 = smul.u32 2, %s20
        %s350 = ssub.s32 3, %s349
        %p351 = scmp.lt.s32.totalorder %s350, 2
        %s352 = scalar_select %p351, %s350, 2
        %s353 = smul.u32 128, %s352
        %v355 = vld [vmem:[%s343] sm:$0xff]
        %v356 = vld [vmem:[%s343 + $0x8] sm:$0xff]
        %v357 = vld [vmem:[%s1] sm:$0xff]
        %v358 = vld [vmem:[%s1 + $0x8] sm:$0xff]
        %v359 = vld [vmem:[%s1 + $0x10] sm:$0xff]
        %v360 = vld [vmem:[%s1 + $0x18] sm:$0xff]
        %v361 = vld [vmem:[%s1 + $0x20] sm:$0xff]
        %v362 = vld [vmem:[%s1 + $0x28] sm:$0xff]
        %v363 = vld [vmem:[%s1 + $0x30] sm:$0xff]
        %v364 = vld [vmem:[%s1 + $0x38] sm:$0xff]
        %v365 = vld [vmem:[%s1 + $0x40] sm:$0xff]
        %v366 = vld [vmem:[%s1 + $0x48] sm:$0xff]
        %v367 = vld [vmem:[%s1 + $0x50] sm:$0xff]
        %v368 = vld [vmem:[%s1 + $0x58] sm:$0xff]
        %v369 = vld [vmem:[%s1 + $0x60] sm:$0xff]
        %v370 = vld [vmem:[%s1 + $0x68] sm:$0xff]
        %v371 = vld [vmem:[%s1 + $0x70] sm:$0xff]
        %v372 = vld [vmem:[%s1 + $0x78] sm:$0xff]
        %v373 = vld [vmem:[%s2] sm:$0xff]
        %v374 = vld [vmem:[%s2 + $0x8] sm:$0xff]
        %v375 = vld [vmem:[%s2 + $0x10] sm:$0xff]
        %v376 = vld [vmem:[%s2 + $0x18] sm:$0xff]
        %v377 = vld [vmem:[%s2 + $0x20] sm:$0xff]
        %v378 = vld [vmem:[%s2 + $0x28] sm:$0xff]
        %v379 = vld [vmem:[%s2 + $0x30] sm:$0xff]
        %v380 = vld [vmem:[%s2 + $0x38] sm:$0xff]
        %v381 = vld [vmem:[%s2 + $0x40] sm:$0xff]
        %v382 = vld [vmem:[%s2 + $0x48] sm:$0xff]
        %v383 = vld [vmem:[%s2 + $0x50] sm:$0xff]
        %v384 = vld [vmem:[%s2 + $0x58] sm:$0xff]
        %v385 = vld [vmem:[%s2 + $0x60] sm:$0xff]
        %v386 = vld [vmem:[%s2 + $0x68] sm:$0xff]
        %v387 = vld [vmem:[%s2 + $0x70] sm:$0xff]
        %v388 = vld [vmem:[%s2 + $0x78] sm:$0xff]
        %390 = vset.pattern.permute.xlu0 0
        %391 = vperm.xlu0 %390, %v373
        %v392 = vpop.permute.xlu0 %391
        %395 = vset.pattern.permute.xlu0 0
        %396 = vperm.xlu0 %395, %v374
        %v397 = vpop.permute.xlu0 %396
        %400 = vset.pattern.permute.xlu0 0
        %401 = vperm.xlu0 %400, %v375
        %v402 = vpop.permute.xlu0 %401
        %405 = vset.pattern.permute.xlu0 0
        %406 = vperm.xlu0 %405, %v376
        %v407 = vpop.permute.xlu0 %406
        %410 = vset.pattern.permute.xlu0 0
        %411 = vperm.xlu0 %410, %v377
        %v412 = vpop.permute.xlu0 %411
        %415 = vset.pattern.permute.xlu0 0
        %416 = vperm.xlu0 %415, %v378
        %v417 = vpop.permute.xlu0 %416
        %420 = vset.pattern.permute.xlu0 0
        %421 = vperm.xlu0 %420, %v379
        %v422 = vpop.permute.xlu0 %421
        %425 = vset.pattern.permute.xlu0 0
        %426 = vperm.xlu0 %425, %v380
        %v427 = vpop.permute.xlu0 %426
        %430 = vset.pattern.permute.xlu0 0
        %431 = vperm.xlu0 %430, %v381
        %v432 = vpop.permute.xlu0 %431
        %435 = vset.pattern.permute.xlu0 0
        %436 = vperm.xlu0 %435, %v382
        %v437 = vpop.permute.xlu0 %436
        %440 = vset.pattern.permute.xlu0 0
        %441 = vperm.xlu0 %440, %v383
        %v442 = vpop.permute.xlu0 %441
        %445 = vset.pattern.permute.xlu0 0
        %446 = vperm.xlu0 %445, %v384
        %v447 = vpop.permute.xlu0 %446
        %450 = vset.pattern.permute.xlu0 0
        %451 = vperm.xlu0 %450, %v385
        %v452 = vpop.permute.xlu0 %451
        %455 = vset.pattern.permute.xlu0 0
        %456 = vperm.xlu0 %455, %v386
        %v457 = vpop.permute.xlu0 %456
        %460 = vset.pattern.permute.xlu0 0
        %461 = vperm.xlu0 %460, %v387
        %v462 = vpop.permute.xlu0 %461
        %465 = vset.pattern.permute.xlu0 0
        %466 = vperm.xlu0 %465, %v388
        %v467 = vpop.permute.xlu0 %466
        %vm469 = vcmask 64512
        %v471 = vsel %vm469, %v357, 0
        %v474 = vsel %vm469, %v358, 0
        %v477 = vsel %vm469, %v359, 0
        %v480 = vsel %vm469, %v360, 0
        %v483 = vsel %vm469, %v361, 0
        %v486 = vsel %vm469, %v362, 0
        %v489 = vsel %vm469, %v363, 0
        %v492 = vsel %vm469, %v364, 0
        %v495 = vsel %vm469, %v365, 0
        %v498 = vsel %vm469, %v366, 0
        %v501 = vsel %vm469, %v367, 0
        %v504 = vsel %vm469, %v368, 0
        %v507 = vsel %vm469, %v369, 0
        %v510 = vsel %vm469, %v370, 0
        %v513 = vsel %vm469, %v371, 0
        %v516 = vsel %vm469, %v372, 0
        %518 = vmatprep.subr.mxu0 %v356
        %519 = vmatpush1.msra.mxu0 %v355
        %520 = vmatprep.subr.mxu0 0.0
        %521 = vmatpush1.msra.mxu0 0.0
        %522 = vmatprep.subr.mxu0 0.0
        %523 = vmatpush1.msra.mxu0 0.0
        %524 = vmatprep.subr.mxu0 0.0
        %525 = vmatpush1.msra.mxu0 0.0
        %526 = vmatprep.subr.mxu0 0.0
        %527 = vmatpush1.msra.mxu0 0.0
        %528 = vmatprep.subr.mxu0 0.0
        %529 = vmatpush1.msra.mxu0 0.0
        %530 = vmatprep.subr.mxu0 0.0
        %531 = vmatpush1.msra.mxu0 0.0
        %532 = vmatprep.subr.mxu0 0.0
        %533 = vmatpush1.msra.mxu0 0.0
        %534 = vmatprep.subr.mxu0 0.0
        %535 = vmatpush1.msra.mxu0 0.0
        %536 = vmatprep.subr.mxu0 0.0
        %537 = vmatpush1.msra.mxu0 0.0
        %538 = vmatprep.subr.mxu0 0.0
        %539 = vmatpush1.msra.mxu0 0.0
        %540 = vmatprep.subr.mxu0 0.0
        %541 = vmatpush1.msra.mxu0 0.0
        %542 = vmatprep.subr.mxu0 0.0
        %543 = vmatpush1.msra.mxu0 0.0
        %544 = vmatprep.subr.mxu0 0.0
        %545 = vmatpush1.msra.mxu0 0.0
        %546 = vmatprep.subr.mxu0 0.0
        %547 = vmatpush1.msra.mxu0 0.0
        %548 = vmatprep.subr.mxu0 0.0
        %549 = vmatpush1.msra.mxu0 0.0
        %550 = vmatprep.subr.mxu0 0.0
        %551 = vmatpush1.msra.mxu0 0.0
        %552 = vmatprep.subr.mxu0 0.0
        %553 = vmatpush1.msra.mxu0 0.0
        %554 = vmatprep.subr.mxu0 0.0
        %555 = vmatpush1.msra.mxu0 0.0
        %556 = vmatprep.subr.mxu0 0.0
        %557 = vmatpush1.msra.mxu0 0.0
        %558 = vmatprep.subr.mxu0 0.0
        %559 = vmatpush1.msra.mxu0 0.0
        %560 = vmatprep.subr.mxu0 0.0
        %561 = vmatpush1.msra.mxu0 0.0
        %562 = vmatprep.subr.mxu0 0.0
        %563 = vmatpush1.msra.mxu0 0.0
        %564 = vmatprep.subr.mxu0 0.0
        %565 = vmatpush1.msra.mxu0 0.0
        %566 = vmatprep.subr.mxu0 0.0
        %567 = vmatpush1.msra.mxu0 0.0
        %568 = vmatprep.subr.mxu0 0.0
        %569 = vmatpush1.msra.mxu0 0.0
        %570 = vmatprep.subr.mxu0 0.0
        %571 = vmatpush1.msra.mxu0 0.0
        %572 = vmatprep.subr.mxu0 0.0
        %573 = vmatpush1.msra.mxu0 0.0
        %574 = vmatprep.subr.mxu0 0.0
        %575 = vmatpush1.msra.mxu0 0.0
        %576 = vmatprep.subr.mxu0 0.0
        %577 = vmatpush1.msra.mxu0 0.0
        %578 = vmatprep.subr.mxu0 0.0
        %579 = vmatpush1.msra.mxu0 0.0
        %580 = vmatprep.subr.mxu0 0.0
        %581 = vmatpush1.msra.mxu0 0.0
        %582 = vmatprep.mubr.f32.mxu0 0.0
        %583 = vmatmul.mubr.f32.gmra.mrb[0].mxu0 %v471
        %v584 = vpop.f32.mrb[0].mxu0
        %v585 = vadd.f32 %v392, %v584
        %v586 = vpop.f32.mrb[0].mxu0
        %v587 = vadd.f32 %v392, %v586
        %588 = vmatprep.mubr.f32.mxu0 0.0
        %589 = vmatmul.mubr.f32.gmra.mrb[0].mxu0 %v474
        %v590 = vpop.f32.mrb[0].mxu0
        %v591 = vadd.f32 %v397, %v590
        %v592 = vpop.f32.mrb[0].mxu0
        %v593 = vadd.f32 %v397, %v592
        %594 = vmatprep.mubr.f32.mxu0 0.0
        %595 = vmatmul.mubr.f32.gmra.mrb[0].mxu0 %v477
        %v596 = vpop.f32.mrb[0].mxu0
        %v597 = vadd.f32 %v402, %v596
        %v598 = vpop.f32.mrb[0].mxu0
        %v599 = vadd.f32 %v402, %v598
        %600 = vmatprep.mubr.f32.mxu0 0.0
        %601 = vmatmul.mubr.f32.gmra.mrb[0].mxu0 %v480
        %v602 = vpop.f32.mrb[0].mxu0
        %v603 = vadd.f32 %v407, %v602
        %v604 = vpop.f32.mrb[0].mxu0
        %v605 = vadd.f32 %v407, %v604
        %606 = vmatprep.mubr.f32.mxu0 0.0
        %607 = vmatmul.mubr.f32.gmra.mrb[0].mxu0 %v483
        %v608 = vpop.f32.mrb[0].mxu0
        %v609 = vadd.f32 %v412, %v608
        %v610 = vpop.f32.mrb[0].mxu0
        %v611 = vadd.f32 %v412, %v610
        %612 = vmatprep.mubr.f32.mxu0 0.0
        %613 = vmatmul.mubr.f32.gmra.mrb[0].mxu0 %v486
        %v614 = vpop.f32.mrb[0].mxu0
        %v615 = vadd.f32 %v417, %v614
        %v616 = vpop.f32.mrb[0].mxu0
        %v617 = vadd.f32 %v417, %v616
        %618 = vmatprep.mubr.f32.mxu0 0.0
        %619 = vmatmul.mubr.f32.gmra.mrb[0].mxu0 %v489
        %v620 = vpop.f32.mrb[0].mxu0
        %v621 = vadd.f32 %v422, %v620
        %v622 = vpop.f32.mrb[0].mxu0
        %v623 = vadd.f32 %v422, %v622
        %624 = vmatprep.mubr.f32.mxu0 0.0
        %625 = vmatmul.mubr.f32.gmra.mrb[0].mxu0 %v492
        %v626 = vpop.f32.mrb[0].mxu0
        %v627 = vadd.f32 %v427, %v626
        %v628 = vpop.f32.mrb[0].mxu0
        %v629 = vadd.f32 %v427, %v628
        %630 = vmatprep.mubr.f32.mxu0 0.0
        %631 = vmatmul.mubr.f32.gmra.mrb[0].mxu0 %v495
        %v632 = vpop.f32.mrb[0].mxu0
        %v633 = vadd.f32 %v432, %v632
        %v634 = vpop.f32.mrb[0].mxu0
        %v635 = vadd.f32 %v432, %v634
        %636 = vmatprep.mubr.f32.mxu0 0.0
        %637 = vmatmul.mubr.f32.gmra.mrb[0].mxu0 %v498
        %v638 = vpop.f32.mrb[0].mxu0
        %v639 = vadd.f32 %v437, %v638
        %v640 = vpop.f32.mrb[0].mxu0
        %v641 = vadd.f32 %v437, %v640
        %642 = vmatprep.mubr.f32.mxu0 0.0
        %643 = vmatmul.mubr.f32.gmra.mrb[0].mxu0 %v501
        %v644 = vpop.f32.mrb[0].mxu0
        %v645 = vadd.f32 %v442, %v644
        %v646 = vpop.f32.mrb[0].mxu0
        %v647 = vadd.f32 %v442, %v646
        %648 = vmatprep.mubr.f32.mxu0 0.0
        %649 = vmatmul.mubr.f32.gmra.mrb[0].mxu0 %v504
        %v650 = vpop.f32.mrb[0].mxu0
        %v651 = vadd.f32 %v447, %v650
        %v652 = vpop.f32.mrb[0].mxu0
        %v653 = vadd.f32 %v447, %v652
        %654 = vmatprep.mubr.f32.mxu0 0.0
        %655 = vmatmul.mubr.f32.gmra.mrb[0].mxu0 %v507
        %v656 = vpop.f32.mrb[0].mxu0
        %v657 = vadd.f32 %v452, %v656
        %v658 = vpop.f32.mrb[0].mxu0
        %v659 = vadd.f32 %v452, %v658
        %660 = vmatprep.mubr.f32.mxu0 0.0
        %661 = vmatmul.mubr.f32.gmra.mrb[0].mxu0 %v510
        %v662 = vpop.f32.mrb[0].mxu0
        %v663 = vadd.f32 %v457, %v662
        %v664 = vpop.f32.mrb[0].mxu0
        %v665 = vadd.f32 %v457, %v664
        %666 = vmatprep.mubr.f32.mxu0 0.0
        %667 = vmatmul.mubr.f32.gmra.mrb[0].mxu0 %v513
        %v668 = vpop.f32.mrb[0].mxu0
        %v669 = vadd.f32 %v462, %v668
        %v670 = vpop.f32.mrb[0].mxu0
        %v671 = vadd.f32 %v462, %v670
        %672 = vmatprep.mubr.f32.mxu0 0.0
        %673 = vmatmul.mubr.f32.gmra.mrb[0].mxu0 %v516
        %v674 = vpop.f32.mrb[0].mxu0
        %v675 = vadd.f32 %v467, %v674
        %v676 = vpop.f32.mrb[0].mxu0
        %v677 = vadd.f32 %v467, %v676
        %678 = vdwg.mxu0
        %v679 = vmax.f32 %v585, 0.0
        %v680 = vmax.f32 %v587, 0.0
        %v681 = vmax.f32 %v591, 0.0
        %v682 = vmax.f32 %v593, 0.0
        %v683 = vmax.f32 %v597, 0.0
        %v684 = vmax.f32 %v599, 0.0
        %v685 = vmax.f32 %v603, 0.0
        %v686 = vmax.f32 %v605, 0.0
        %v687 = vmax.f32 %v609, 0.0
        %v688 = vmax.f32 %v611, 0.0
        %v689 = vmax.f32 %v615, 0.0
        %v690 = vmax.f32 %v617, 0.0
        %v691 = vmax.f32 %v621, 0.0
        %v692 = vmax.f32 %v623, 0.0
        %v693 = vmax.f32 %v627, 0.0
        %v694 = vmax.f32 %v629, 0.0
        %v695 = vmax.f32 %v633, 0.0
        %v696 = vmax.f32 %v635, 0.0
        %v697 = vmax.f32 %v639, 0.0
        %v698 = vmax.f32 %v641, 0.0
        %v699 = vmax.f32 %v645, 0.0
        %v700 = vmax.f32 %v647, 0.0
        %v701 = vmax.f32 %v651, 0.0
        %v702 = vmax.f32 %v653, 0.0
        %v703 = vmax.f32 %v657, 0.0
        %v704 = vmax.f32 %v659, 0.0
        %v705 = vmax.f32 %v663, 0.0
        %v706 = vmax.f32 %v665, 0.0
        %v707 = vmax.f32 %v669, 0.0
        %v708 = vmax.f32 %v671, 0.0
        %v709 = vmax.f32 %v675, 0.0
        %v710 = vmax.f32 %v677, 0.0
        %v711 = vpack.c.bf16 %v681, %v679
        %v712 = vpack.c.bf16 %v682, %v680
        %v713 = vpack.c.bf16 %v685, %v683
        %v714 = vpack.c.bf16 %v686, %v684
        %v715 = vpack.c.bf16 %v689, %v687
        %v716 = vpack.c.bf16 %v690, %v688
        %v717 = vpack.c.bf16 %v693, %v691
        %v718 = vpack.c.bf16 %v694, %v692
        %v719 = vpack.c.bf16 %v697, %v695
        %v720 = vpack.c.bf16 %v698, %v696
        %v721 = vpack.c.bf16 %v701, %v699
        %v722 = vpack.c.bf16 %v702, %v700
        %v723 = vpack.c.bf16 %v705, %v703
        %v724 = vpack.c.bf16 %v706, %v704
        %v725 = vpack.c.bf16 %v709, %v707
        %v726 = vpack.c.bf16 %v710, %v708
        %v727 = vld [vmem:[%s3] sm:$0xf]
        %v728 = vld [vmem:[%s3 + $0x4] sm:$0xf]
        %v729 = vld [vmem:[%s3 + $0x8] sm:$0xf]
        %v730 = vld [vmem:[%s3 + $0xc] sm:$0xf]
        %v731 = vld [vmem:[%s3 + $0x10] sm:$0xf]
        %v732 = vld [vmem:[%s3 + $0x14] sm:$0xf]
        %v733 = vld [vmem:[%s3 + $0x18] sm:$0xf]
        %v734 = vld [vmem:[%s3 + $0x1c] sm:$0xf]
        %v735 = vld [vmem:[%s3 + $0x20] sm:$0xf]
        %v736 = vld [vmem:[%s3 + $0x24] sm:$0xf]
        %v737 = vld [vmem:[%s3 + $0x28] sm:$0xf]
        %v738 = vld [vmem:[%s3 + $0x2c] sm:$0xf]
        %v739 = vld [vmem:[%s3 + $0x30] sm:$0xf]
        %v740 = vld [vmem:[%s3 + $0x34] sm:$0xf]
        %v741 = vld [vmem:[%s3 + $0x38] sm:$0xf]
        %v742 = vld [vmem:[%s3 + $0x3c] sm:$0xf]
        %v743 = vld [vmem:[%s3 + $0x40] sm:$0xf]
        %v744 = vld [vmem:[%s3 + $0x44] sm:$0xf]
        %v745 = vld [vmem:[%s3 + $0x48] sm:$0xf]
        %v746 = vld [vmem:[%s3 + $0x4c] sm:$0xf]
        %v747 = vld [vmem:[%s3 + $0x50] sm:$0xf]
        %v748 = vld [vmem:[%s3 + $0x54] sm:$0xf]
        %v749 = vld [vmem:[%s3 + $0x58] sm:$0xf]
        %v750 = vld [vmem:[%s3 + $0x5c] sm:$0xf]
        %v751 = vld [vmem:[%s3 + $0x60] sm:$0xf]
        %v752 = vld [vmem:[%s3 + $0x64] sm:$0xf]
        %v753 = vld [vmem:[%s3 + $0x68] sm:$0xf]
        %v754 = vld [vmem:[%s3 + $0x6c] sm:$0xf]
        %v755 = vld [vmem:[%s3 + $0x70] sm:$0xf]
        %v756 = vld [vmem:[%s3 + $0x74] sm:$0xf]
        %v757 = vld [vmem:[%s3 + $0x78] sm:$0xf]
        %v758 = vld [vmem:[%s3 + $0x7c] sm:$0xf]
        %v759 = vld [vmem:[%s4] sm:$0xff]
        %v760 = vld [vmem:[%s4 + $0x8] sm:$0xff]
        %v761 = vld [vmem:[%s4 + $0x10] sm:$0xff]
        %v762 = vld [vmem:[%s4 + $0x18] sm:$0xff]
        %v763 = vld [vmem:[%s4 + $0x20] sm:$0xff]
        %v764 = vld [vmem:[%s4 + $0x28] sm:$0xff]
        %v765 = vld [vmem:[%s4 + $0x30] sm:$0xff]
        %v766 = vld [vmem:[%s4 + $0x38] sm:$0xff]
        %v767 = vld [vmem:[%s4 + $0x40] sm:$0xff]
        %v768 = vld [vmem:[%s4 + $0x48] sm:$0xff]
        %v769 = vld [vmem:[%s4 + $0x50] sm:$0xff]
        %v770 = vld [vmem:[%s4 + $0x58] sm:$0xff]
        %v771 = vld [vmem:[%s4 + $0x60] sm:$0xff]
        %v772 = vld [vmem:[%s4 + $0x68] sm:$0xff]
        %v773 = vld [vmem:[%s4 + $0x70] sm:$0xff]
        %v774 = vld [vmem:[%s4 + $0x78] sm:$0xff]
        %v775 = vld [vmem:[%s4 + $0x80] sm:$0xff]
        %v776 = vld [vmem:[%s4 + $0x88] sm:$0xff]
        %v777 = vld [vmem:[%s4 + $0x90] sm:$0xff]
        %v778 = vld [vmem:[%s4 + $0x98] sm:$0xff]
        %v779 = vld [vmem:[%s4 + $0xa0] sm:$0xff]
        %v780 = vld [vmem:[%s4 + $0xa8] sm:$0xff]
        %v781 = vld [vmem:[%s4 + $0xb0] sm:$0xff]
        %v782 = vld [vmem:[%s4 + $0xb8] sm:$0xff]
        %v783 = vld [vmem:[%s4 + $0xc0] sm:$0xff]
        %v784 = vld [vmem:[%s4 + $0xc8] sm:$0xff]
        %v785 = vld [vmem:[%s4 + $0xd0] sm:$0xff]
        %v786 = vld [vmem:[%s4 + $0xd8] sm:$0xff]
        %v787 = vld [vmem:[%s4 + $0xe0] sm:$0xff]
        %v788 = vld [vmem:[%s4 + $0xe8] sm:$0xff]
        %v789 = vld [vmem:[%s4 + $0xf0] sm:$0xff]
        %v790 = vld [vmem:[%s4 + $0xf8] sm:$0xff]
        %792 = vset.pattern.permute.xlu0 0
        %793 = vperm.xlu0 %792, %v759
        %v794 = vpop.permute.xlu0 %793
        %797 = vset.pattern.permute.xlu0 0
        %798 = vperm.xlu0 %797, %v760
        %v799 = vpop.permute.xlu0 %798
        %802 = vset.pattern.permute.xlu0 0
        %803 = vperm.xlu0 %802, %v761
        %v804 = vpop.permute.xlu0 %803
        %807 = vset.pattern.permute.xlu0 0
        %808 = vperm.xlu0 %807, %v762
        %v809 = vpop.permute.xlu0 %808
        %812 = vset.pattern.permute.xlu0 0
        %813 = vperm.xlu0 %812, %v763
        %v814 = vpop.permute.xlu0 %813
        %817 = vset.pattern.permute.xlu0 0
        %818 = vperm.xlu0 %817, %v764
        %v819 = vpop.permute.xlu0 %818
        %822 = vset.pattern.permute.xlu0 0
        %823 = vperm.xlu0 %822, %v765
        %v824 = vpop.permute.xlu0 %823
        %827 = vset.pattern.permute.xlu0 0
        %828 = vperm.xlu0 %827, %v766
        %v829 = vpop.permute.xlu0 %828
        %832 = vset.pattern.permute.xlu0 0
        %833 = vperm.xlu0 %832, %v767
        %v834 = vpop.permute.xlu0 %833
        %837 = vset.pattern.permute.xlu0 0
        %838 = vperm.xlu0 %837, %v768
        %v839 = vpop.permute.xlu0 %838
        %842 = vset.pattern.permute.xlu0 0
        %843 = vperm.xlu0 %842, %v769
        %v844 = vpop.permute.xlu0 %843
        %847 = vset.pattern.permute.xlu0 0
        %848 = vperm.xlu0 %847, %v770
        %v849 = vpop.permute.xlu0 %848
        %852 = vset.pattern.permute.xlu0 0
        %853 = vperm.xlu0 %852, %v771
        %v854 = vpop.permute.xlu0 %853
        %857 = vset.pattern.permute.xlu0 0
        %858 = vperm.xlu0 %857, %v772
        %v859 = vpop.permute.xlu0 %858
        %862 = vset.pattern.permute.xlu0 0
        %863 = vperm.xlu0 %862, %v773
        %v864 = vpop.permute.xlu0 %863
        %867 = vset.pattern.permute.xlu0 0
        %868 = vperm.xlu0 %867, %v774
        %v869 = vpop.permute.xlu0 %868
        %872 = vset.pattern.permute.xlu0 0
        %873 = vperm.xlu0 %872, %v775
        %v874 = vpop.permute.xlu0 %873
        %877 = vset.pattern.permute.xlu0 0
        %878 = vperm.xlu0 %877, %v776
        %v879 = vpop.permute.xlu0 %878
        %882 = vset.pattern.permute.xlu0 0
        %883 = vperm.xlu0 %882, %v777
        %v884 = vpop.permute.xlu0 %883
        %887 = vset.pattern.permute.xlu0 0
        %888 = vperm.xlu0 %887, %v778
        %v889 = vpop.permute.xlu0 %888
        %892 = vset.pattern.permute.xlu0 0
        %893 = vperm.xlu0 %892, %v779
        %v894 = vpop.permute.xlu0 %893
        %897 = vset.pattern.permute.xlu0 0
        %898 = vperm.xlu0 %897, %v780
        %v899 = vpop.permute.xlu0 %898
        %902 = vset.pattern.permute.xlu0 0
        %903 = vperm.xlu0 %902, %v781
        %v904 = vpop.permute.xlu0 %903
        %907 = vset.pattern.permute.xlu0 0
        %908 = vperm.xlu0 %907, %v782
        %v909 = vpop.permute.xlu0 %908
        %912 = vset.pattern.permute.xlu0 0
        %913 = vperm.xlu0 %912, %v783
        %v914 = vpop.permute.xlu0 %913
        %917 = vset.pattern.permute.xlu0 0
        %918 = vperm.xlu0 %917, %v784
        %v919 = vpop.permute.xlu0 %918
        %922 = vset.pattern.permute.xlu0 0
        %923 = vperm.xlu0 %922, %v785
        %v924 = vpop.permute.xlu0 %923
        %927 = vset.pattern.permute.xlu0 0
        %928 = vperm.xlu0 %927, %v786
        %v929 = vpop.permute.xlu0 %928
        %932 = vset.pattern.permute.xlu0 0
        %933 = vperm.xlu0 %932, %v787
        %v934 = vpop.permute.xlu0 %933
        %937 = vset.pattern.permute.xlu0 0
        %938 = vperm.xlu0 %937, %v788
        %v939 = vpop.permute.xlu0 %938
        %942 = vset.pattern.permute.xlu0 0
        %943 = vperm.xlu0 %942, %v789
        %v944 = vpop.permute.xlu0 %943
        %947 = vset.pattern.permute.xlu0 0
        %948 = vperm.xlu0 %947, %v790
        %v949 = vpop.permute.xlu0 %948
        %v983 = vunpack.c.l.b16 %v727
        %v984 = vunpack.c.l.b16 %v728
        %v985 = vunpack.c.l.b16 %v729
        %v986 = vunpack.c.l.b16 %v730
        %v987 = vunpack.c.l.b16 %v731
        %v988 = vunpack.c.l.b16 %v732
        %v989 = vunpack.c.l.b16 %v733
        %v990 = vunpack.c.l.b16 %v734
        %v991 = vunpack.c.l.b16 %v735
        %v992 = vunpack.c.l.b16 %v736
        %v993 = vunpack.c.l.b16 %v737
        %v994 = vunpack.c.l.b16 %v738
        %v995 = vunpack.c.l.b16 %v739
        %v996 = vunpack.c.l.b16 %v740
        %v997 = vunpack.c.l.b16 %v741
        %v998 = vunpack.c.l.b16 %v742
        %v999 = vunpack.c.l.b16 %v743
        %v1000 = vunpack.c.l.b16 %v744
        %v1001 = vunpack.c.l.b16 %v745
        %v1002 = vunpack.c.l.b16 %v746
        %v1003 = vunpack.c.l.b16 %v747
        %v1004 = vunpack.c.l.b16 %v748
        %v1005 = vunpack.c.l.b16 %v749
        %v1006 = vunpack.c.l.b16 %v750
        %v1007 = vunpack.c.l.b16 %v751
        %v1008 = vunpack.c.l.b16 %v752
        %v1009 = vunpack.c.l.b16 %v753
        %v1010 = vunpack.c.l.b16 %v754
        %v1011 = vunpack.c.l.b16 %v755
        %v1012 = vunpack.c.l.b16 %v756
        %v1013 = vunpack.c.l.b16 %v757
        %v1014 = vunpack.c.l.b16 %v758
        %v1015 = vpack.c.b16 %v984, %v983
        %v1016 = vpack.c.b16 %v986, %v985
        %v1017 = vpack.c.b16 %v988, %v987
        %v1018 = vpack.c.b16 %v990, %v989
        %v1019 = vpack.c.b16 %v992, %v991
        %v1020 = vpack.c.b16 %v994, %v993
        %v1021 = vpack.c.b16 %v996, %v995
        %v1022 = vpack.c.b16 %v998, %v997
        %v1023 = vpack.c.b16 %v1000, %v999
        %v1024 = vpack.c.b16 %v1002, %v1001
        %v1025 = vpack.c.b16 %v1004, %v1003
        %v1026 = vpack.c.b16 %v1006, %v1005
        %v1027 = vpack.c.b16 %v1008, %v1007
        %v1028 = vpack.c.b16 %v1010, %v1009
        %v1029 = vpack.c.b16 %v1012, %v1011
        %v1030 = vpack.c.b16 %v1014, %v1013
        %1047 = vmatprep.subr.bf16.mxu0 %v712
        %1048 = vmatpush1.bf16.msra.mxu0 %v711
        %1049 = vmatprep.subr.bf16.mxu0 %v714
        %1050 = vmatpush1.bf16.msra.mxu0 %v713
        %1051 = vmatprep.subr.bf16.mxu0 %v716
        %1052 = vmatpush1.bf16.msra.mxu0 %v715
        %1053 = vmatprep.subr.bf16.mxu0 %v718
        %1054 = vmatpush1.bf16.msra.mxu0 %v717
        %1055 = vmatprep.subr.bf16.mxu0 %v720
        %1056 = vmatpush1.bf16.msra.mxu0 %v719
        %1057 = vmatprep.subr.bf16.mxu0 %v722
        %1058 = vmatpush1.bf16.msra.mxu0 %v721
        %1059 = vmatprep.subr.bf16.mxu0 %v724
        %1060 = vmatpush1.bf16.msra.mxu0 %v723
        %1061 = vmatprep.subr.bf16.mxu0 %v726
        %1062 = vmatpush1.bf16.msra.mxu0 %v725
        %1063 = vmatprep.subr.bf16.mxu0 0
        %1064 = vmatpush1.bf16.msra.mxu0 0
        %1065 = vmatprep.subr.bf16.mxu0 0
        %1066 = vmatpush1.bf16.msra.mxu0 0
        %1067 = vmatprep.subr.bf16.mxu0 0
        %1068 = vmatpush1.bf16.msra.mxu0 0
        %1069 = vmatprep.subr.bf16.mxu0 0
        %1070 = vmatpush1.bf16.msra.mxu0 0
        %1071 = vmatprep.subr.bf16.mxu0 0
        %1072 = vmatpush1.bf16.msra.mxu0 0
        %1073 = vmatprep.subr.bf16.mxu0 0
        %1074 = vmatpush1.bf16.msra.mxu0 0
        %1075 = vmatprep.subr.bf16.mxu0 0
        %1076 = vmatpush1.bf16.msra.mxu0 0
        %1077 = vmatprep.subr.bf16.mxu0 0
        %1078 = vmatpush1.bf16.msra.mxu0 0
        %1079 = vmatprep.mubr.bf16.mxu0 0
        %1080 = vmatmul.mubr.bf16.gmra.mrb[0].mxu0 %v1015
        %v1081 = vpop.f32.mrb[0].mxu0
        %v1082 = vadd.f32 %v794, %v1081
        %v1083 = vpop.f32.mrb[0].mxu0
        %v1084 = vadd.f32 %v794, %v1083
        %v1085 = vpop.f32.mrb[0].mxu0
        %v1086 = vadd.f32 %v799, %v1085
        %v1087 = vpop.f32.mrb[0].mxu0
        %v1088 = vadd.f32 %v799, %v1087
        %1089 = vmatprep.mubr.bf16.mxu0 0
        %1090 = vmatmul.mubr.bf16.gmra.mrb[0].mxu0 %v1016
        %v1091 = vpop.f32.mrb[0].mxu0
        %v1092 = vadd.f32 %v804, %v1091
        %v1093 = vpop.f32.mrb[0].mxu0
        %v1094 = vadd.f32 %v804, %v1093
        %v1095 = vpop.f32.mrb[0].mxu0
        %v1096 = vadd.f32 %v809, %v1095
        %v1097 = vpop.f32.mrb[0].mxu0
        %v1098 = vadd.f32 %v809, %v1097
        %1099 = vmatprep.mubr.bf16.mxu0 0
        %1100 = vmatmul.mubr.bf16.gmra.mrb[0].mxu0 %v1017
        %v1101 = vpop.f32.mrb[0].mxu0
        %v1102 = vadd.f32 %v814, %v1101
        %v1103 = vpop.f32.mrb[0].mxu0
        %v1104 = vadd.f32 %v814, %v1103
        %v1105 = vpop.f32.mrb[0].mxu0
        %v1106 = vadd.f32 %v819, %v1105
        %v1107 = vpop.f32.mrb[0].mxu0
        %v1108 = vadd.f32 %v819, %v1107
        %1109 = vmatprep.mubr.bf16.mxu0 0
        %1110 = vmatmul.mubr.bf16.gmra.mrb[0].mxu0 %v1018
        %v1111 = vpop.f32.mrb[0].mxu0
        %v1112 = vadd.f32 %v824, %v1111
        %v1113 = vpop.f32.mrb[0].mxu0
        %v1114 = vadd.f32 %v824, %v1113
        %v1115 = vpop.f32.mrb[0].mxu0
        %v1116 = vadd.f32 %v829, %v1115
        %v1117 = vpop.f32.mrb[0].mxu0
        %v1118 = vadd.f32 %v829, %v1117
        %1119 = vmatprep.mubr.bf16.mxu0 0
        %1120 = vmatmul.mubr.bf16.gmra.mrb[0].mxu0 %v1019
        %v1121 = vpop.f32.mrb[0].mxu0
        %v1122 = vadd.f32 %v834, %v1121
        %v1123 = vpop.f32.mrb[0].mxu0
        %v1124 = vadd.f32 %v834, %v1123
        %v1125 = vpop.f32.mrb[0].mxu0
        %v1126 = vadd.f32 %v839, %v1125
        %v1127 = vpop.f32.mrb[0].mxu0
        %v1128 = vadd.f32 %v839, %v1127
        %1129 = vmatprep.mubr.bf16.mxu0 0
        %1130 = vmatmul.mubr.bf16.gmra.mrb[0].mxu0 %v1020
        %v1131 = vpop.f32.mrb[0].mxu0
        %v1132 = vadd.f32 %v844, %v1131
        %v1133 = vpop.f32.mrb[0].mxu0
        %v1134 = vadd.f32 %v844, %v1133
        %v1135 = vpop.f32.mrb[0].mxu0
        %v1136 = vadd.f32 %v849, %v1135
        %v1137 = vpop.f32.mrb[0].mxu0
        %v1138 = vadd.f32 %v849, %v1137
        %1139 = vmatprep.mubr.bf16.mxu0 0
        %1140 = vmatmul.mubr.bf16.gmra.mrb[0].mxu0 %v1021
        %v1141 = vpop.f32.mrb[0].mxu0
        %v1142 = vadd.f32 %v854, %v1141
        %v1143 = vpop.f32.mrb[0].mxu0
        %v1144 = vadd.f32 %v854, %v1143
        %v1145 = vpop.f32.mrb[0].mxu0
        %v1146 = vadd.f32 %v859, %v1145
        %v1147 = vpop.f32.mrb[0].mxu0
        %v1148 = vadd.f32 %v859, %v1147
        %1149 = vmatprep.mubr.bf16.mxu0 0
        %1150 = vmatmul.mubr.bf16.gmra.mrb[0].mxu0 %v1022
        %v1151 = vpop.f32.mrb[0].mxu0
        %v1152 = vadd.f32 %v864, %v1151
        %v1153 = vpop.f32.mrb[0].mxu0
        %v1154 = vadd.f32 %v864, %v1153
        %v1155 = vpop.f32.mrb[0].mxu0
        %v1156 = vadd.f32 %v869, %v1155
        %v1157 = vpop.f32.mrb[0].mxu0
        %v1158 = vadd.f32 %v869, %v1157
        %1159 = vmatprep.mubr.bf16.mxu0 0
        %1160 = vmatmul.mubr.bf16.gmra.mrb[0].mxu0 %v1023
        %v1161 = vpop.f32.mrb[0].mxu0
        %v1162 = vadd.f32 %v874, %v1161
        %v1163 = vpop.f32.mrb[0].mxu0
        %v1164 = vadd.f32 %v874, %v1163
        %v1165 = vpop.f32.mrb[0].mxu0
        %v1166 = vadd.f32 %v879, %v1165
        %v1167 = vpop.f32.mrb[0].mxu0
        %v1168 = vadd.f32 %v879, %v1167
        %1169 = vmatprep.mubr.bf16.mxu0 0
        %1170 = vmatmul.mubr.bf16.gmra.mrb[0].mxu0 %v1024
        %v1171 = vpop.f32.mrb[0].mxu0
        %v1172 = vadd.f32 %v884, %v1171
        %v1173 = vpop.f32.mrb[0].mxu0
        %v1174 = vadd.f32 %v884, %v1173
        %v1175 = vpop.f32.mrb[0].mxu0
        %v1176 = vadd.f32 %v889, %v1175
        %v1177 = vpop.f32.mrb[0].mxu0
        %v1178 = vadd.f32 %v889, %v1177
        %1179 = vmatprep.mubr.bf16.mxu0 0
        %1180 = vmatmul.mubr.bf16.gmra.mrb[0].mxu0 %v1025
        %v1181 = vpop.f32.mrb[0].mxu0
        %v1182 = vadd.f32 %v894, %v1181
        %v1183 = vpop.f32.mrb[0].mxu0
        %v1184 = vadd.f32 %v894, %v1183
        %v1185 = vpop.f32.mrb[0].mxu0
        %v1186 = vadd.f32 %v899, %v1185
        %v1187 = vpop.f32.mrb[0].mxu0
        %v1188 = vadd.f32 %v899, %v1187
        %1189 = vmatprep.mubr.bf16.mxu0 0
        %1190 = vmatmul.mubr.bf16.gmra.mrb[0].mxu0 %v1026
        %v1191 = vpop.f32.mrb[0].mxu0
        %v1192 = vadd.f32 %v904, %v1191
        %v1193 = vpop.f32.mrb[0].mxu0
        %v1194 = vadd.f32 %v904, %v1193
        %v1195 = vpop.f32.mrb[0].mxu0
        %v1196 = vadd.f32 %v909, %v1195
        %v1197 = vpop.f32.mrb[0].mxu0
        %v1198 = vadd.f32 %v909, %v1197
        %1199 = vmatprep.mubr.bf16.mxu0 0
        %1200 = vmatmul.mubr.bf16.gmra.mrb[0].mxu0 %v1027
        %v1201 = vpop.f32.mrb[0].mxu0
        %v1202 = vadd.f32 %v914, %v1201
        %v1203 = vpop.f32.mrb[0].mxu0
        %v1204 = vadd.f32 %v914, %v1203
        %v1205 = vpop.f32.mrb[0].mxu0
        %v1206 = vadd.f32 %v919, %v1205
        %v1207 = vpop.f32.mrb[0].mxu0
        %v1208 = vadd.f32 %v919, %v1207
        %1209 = vmatprep.mubr.bf16.mxu0 0
        %1210 = vmatmul.mubr.bf16.gmra.mrb[0].mxu0 %v1028
        %v1211 = vpop.f32.mrb[0].mxu0
        %v1212 = vadd.f32 %v924, %v1211
        %v1213 = vpop.f32.mrb[0].mxu0
        %v1214 = vadd.f32 %v924, %v1213
        %v1215 = vpop.f32.mrb[0].mxu0
        %v1216 = vadd.f32 %v929, %v1215
        %v1217 = vpop.f32.mrb[0].mxu0
        %v1218 = vadd.f32 %v929, %v1217
        %1219 = vmatprep.mubr.bf16.mxu0 0
        %1220 = vmatmul.mubr.bf16.gmra.mrb[0].mxu0 %v1029
        %v1221 = vpop.f32.mrb[0].mxu0
        %v1222 = vadd.f32 %v934, %v1221
        %v1223 = vpop.f32.mrb[0].mxu0
        %v1224 = vadd.f32 %v934, %v1223
        %v1225 = vpop.f32.mrb[0].mxu0
        %v1226 = vadd.f32 %v939, %v1225
        %v1227 = vpop.f32.mrb[0].mxu0
        %v1228 = vadd.f32 %v939, %v1227
        %1229 = vmatprep.mubr.bf16.mxu0 0
        %1230 = vmatmul.mubr.bf16.gmra.mrb[0].mxu0 %v1030
        %v1231 = vpop.f32.mrb[0].mxu0
        %v1232 = vadd.f32 %v944, %v1231
        %v1233 = vpop.f32.mrb[0].mxu0
        %v1234 = vadd.f32 %v944, %v1233
        %v1235 = vpop.f32.mrb[0].mxu0
        %v1236 = vadd.f32 %v949, %v1235
        %v1237 = vpop.f32.mrb[0].mxu0
        %v1238 = vadd.f32 %v949, %v1237
        %1239 = vdwg.mxu0
        %v1240 = vmax.f32 %v1082, 0.0
        %v1241 = vmax.f32 %v1084, 0.0
        %v1242 = vmax.f32 %v1086, 0.0
        %v1243 = vmax.f32 %v1088, 0.0
        %v1244 = vmax.f32 %v1092, 0.0
        %v1245 = vmax.f32 %v1094, 0.0
        %v1246 = vmax.f32 %v1096, 0.0
        %v1247 = vmax.f32 %v1098, 0.0
        %v1248 = vmax.f32 %v1102, 0.0
        %v1249 = vmax.f32 %v1104, 0.0
        %v1250 = vmax.f32 %v1106, 0.0
        %v1251 = vmax.f32 %v1108, 0.0
        %v1252 = vmax.f32 %v1112, 0.0
        %v1253 = vmax.f32 %v1114, 0.0
        %v1254 = vmax.f32 %v1116, 0.0
        %v1255 = vmax.f32 %v1118, 0.0
        %v1256 = vmax.f32 %v1122, 0.0
        %v1257 = vmax.f32 %v1124, 0.0
        %v1258 = vmax.f32 %v1126, 0.0
        %v1259 = vmax.f32 %v1128, 0.0
        %v1260 = vmax.f32 %v1132, 0.0
        %v1261 = vmax.f32 %v1134, 0.0
        %v1262 = vmax.f32 %v1136, 0.0
        %v1263 = vmax.f32 %v1138, 0.0
        %v1264 = vmax.f32 %v1142, 0.0
        %v1265 = vmax.f32 %v1144, 0.0
        %v1266 = vmax.f32 %v1146, 0.0
        %v1267 = vmax.f32 %v1148, 0.0
        %v1268 = vmax.f32 %v1152, 0.0
        %v1269 = vmax.f32 %v1154, 0.0
        %v1270 = vmax.f32 %v1156, 0.0
        %v1271 = vmax.f32 %v1158, 0.0
        %v1272 = vmax.f32 %v1162, 0.0
        %v1273 = vmax.f32 %v1164, 0.0
        %v1274 = vmax.f32 %v1166, 0.0
        %v1275 = vmax.f32 %v1168, 0.0
        %v1276 = vmax.f32 %v1172, 0.0
        %v1277 = vmax.f32 %v1174, 0.0
        %v1278 = vmax.f32 %v1176, 0.0
        %v1279 = vmax.f32 %v1178, 0.0
        %v1280 = vmax.f32 %v1182, 0.0
        %v1281 = vmax.f32 %v1184, 0.0
        %v1282 = vmax.f32 %v1186, 0.0
        %v1283 = vmax.f32 %v1188, 0.0
        %v1284 = vmax.f32 %v1192, 0.0
        %v1285 = vmax.f32 %v1194, 0.0
        %v1286 = vmax.f32 %v1196, 0.0
        %v1287 = vmax.f32 %v1198, 0.0
        %v1288 = vmax.f32 %v1202, 0.0
        %v1289 = vmax.f32 %v1204, 0.0
        %v1290 = vmax.f32 %v1206, 0.0
        %v1291 = vmax.f32 %v1208, 0.0
        %v1292 = vmax.f32 %v1212, 0.0
        %v1293 = vmax.f32 %v1214, 0.0
        %v1294 = vmax.f32 %v1216, 0.0
        %v1295 = vmax.f32 %v1218, 0.0
        %v1296 = vmax.f32 %v1222, 0.0
        %v1297 = vmax.f32 %v1224, 0.0
        %v1298 = vmax.f32 %v1226, 0.0
        %v1299 = vmax.f32 %v1228, 0.0
        %v1300 = vmax.f32 %v1232, 0.0
        %v1301 = vmax.f32 %v1234, 0.0
        %v1302 = vmax.f32 %v1236, 0.0
        %v1303 = vmax.f32 %v1238, 0.0
        %v1304 = vpack.c.bf16 %v1242, %v1240
        %v1305 = vpack.c.bf16 %v1243, %v1241
        %v1306 = vpack.c.bf16 %v1246, %v1244
        %v1307 = vpack.c.bf16 %v1247, %v1245
        %v1308 = vpack.c.bf16 %v1250, %v1248
        %v1309 = vpack.c.bf16 %v1251, %v1249
        %v1310 = vpack.c.bf16 %v1254, %v1252
        %v1311 = vpack.c.bf16 %v1255, %v1253
        %v1312 = vpack.c.bf16 %v1258, %v1256
        %v1313 = vpack.c.bf16 %v1259, %v1257
        %v1314 = vpack.c.bf16 %v1262, %v1260
        %v1315 = vpack.c.bf16 %v1263, %v1261
        %v1316 = vpack.c.bf16 %v1266, %v1264
        %v1317 = vpack.c.bf16 %v1267, %v1265
        %v1318 = vpack.c.bf16 %v1270, %v1268
        %v1319 = vpack.c.bf16 %v1271, %v1269
        %v1320 = vpack.c.bf16 %v1274, %v1272
        %v1321 = vpack.c.bf16 %v1275, %v1273
        %v1322 = vpack.c.bf16 %v1278, %v1276
        %v1323 = vpack.c.bf16 %v1279, %v1277
        %v1324 = vpack.c.bf16 %v1282, %v1280
        %v1325 = vpack.c.bf16 %v1283, %v1281
        %v1326 = vpack.c.bf16 %v1286, %v1284
        %v1327 = vpack.c.bf16 %v1287, %v1285
        %v1328 = vpack.c.bf16 %v1290, %v1288
        %v1329 = vpack.c.bf16 %v1291, %v1289
        %v1330 = vpack.c.bf16 %v1294, %v1292
        %v1331 = vpack.c.bf16 %v1295, %v1293
        %v1332 = vpack.c.bf16 %v1298, %v1296
        %v1333 = vpack.c.bf16 %v1299, %v1297
        %v1334 = vpack.c.bf16 %v1302, %v1300
        %v1335 = vpack.c.bf16 %v1303, %v1301
        %v1336 = vld [vmem:[%s5] sm:$0xff]
        %v1337 = vld [vmem:[%s5 + $0x8] sm:$0xff]
        %v1338 = vld [vmem:[%s5 + $0x10] sm:$0xff]
        %v1339 = vld [vmem:[%s5 + $0x18] sm:$0xff]
        %v1340 = vld [vmem:[%s5 + $0x20] sm:$0xff]
        %v1341 = vld [vmem:[%s5 + $0x28] sm:$0xff]
        %v1342 = vld [vmem:[%s5 + $0x30] sm:$0xff]
        %v1343 = vld [vmem:[%s5 + $0x38] sm:$0xff]
        %v1344 = vld [vmem:[%s5 + $0x40] sm:$0xff]
        %v1345 = vld [vmem:[%s5 + $0x48] sm:$0xff]
        %v1346 = vld [vmem:[%s5 + $0x50] sm:$0xff]
        %v1347 = vld [vmem:[%s5 + $0x58] sm:$0xff]
        %v1348 = vld [vmem:[%s5 + $0x60] sm:$0xff]
        %v1349 = vld [vmem:[%s5 + $0x68] sm:$0xff]
        %v1350 = vld [vmem:[%s5 + $0x70] sm:$0xff]
        %v1351 = vld [vmem:[%s5 + $0x78] sm:$0xff]
        %v1352 = vld [vmem:[%s6] sm:$0xff]
        %v1353 = vld [vmem:[%s6 + $0x8] sm:$0xff]
        %v1354 = vld [vmem:[%s6 + $0x10] sm:$0xff]
        %v1355 = vld [vmem:[%s6 + $0x18] sm:$0xff]
        %v1356 = vld [vmem:[%s6 + $0x20] sm:$0xff]
        %v1357 = vld [vmem:[%s6 + $0x28] sm:$0xff]
        %v1358 = vld [vmem:[%s6 + $0x30] sm:$0xff]
        %v1359 = vld [vmem:[%s6 + $0x38] sm:$0xff]
        %v1360 = vld [vmem:[%s6 + $0x40] sm:$0xff]
        %v1361 = vld [vmem:[%s6 + $0x48] sm:$0xff]
        %v1362 = vld [vmem:[%s6 + $0x50] sm:$0xff]
        %v1363 = vld [vmem:[%s6 + $0x58] sm:$0xff]
        %v1364 = vld [vmem:[%s6 + $0x60] sm:$0xff]
        %v1365 = vld [vmem:[%s6 + $0x68] sm:$0xff]
        %v1366 = vld [vmem:[%s6 + $0x70] sm:$0xff]
        %v1367 = vld [vmem:[%s6 + $0x78] sm:$0xff]
        %1369 = vset.pattern.permute.xlu0 0
        %1370 = vperm.xlu0 %1369, %v1352
        %v1371 = vpop.permute.xlu0 %1370
        %1374 = vset.pattern.permute.xlu0 0
        %1375 = vperm.xlu0 %1374, %v1353
        %v1376 = vpop.permute.xlu0 %1375
        %1379 = vset.pattern.permute.xlu0 0
        %1380 = vperm.xlu0 %1379, %v1354
        %v1381 = vpop.permute.xlu0 %1380
        %1384 = vset.pattern.permute.xlu0 0
        %1385 = vperm.xlu0 %1384, %v1355
        %v1386 = vpop.permute.xlu0 %1385
        %1389 = vset.pattern.permute.xlu0 0
        %1390 = vperm.xlu0 %1389, %v1356
        %v1391 = vpop.permute.xlu0 %1390
        %1394 = vset.pattern.permute.xlu0 0
        %1395 = vperm.xlu0 %1394, %v1357
        %v1396 = vpop.permute.xlu0 %1395
        %1399 = vset.pattern.permute.xlu0 0
        %1400 = vperm.xlu0 %1399, %v1358
        %v1401 = vpop.permute.xlu0 %1400
        %1404 = vset.pattern.permute.xlu0 0
        %1405 = vperm.xlu0 %1404, %v1359
        %v1406 = vpop.permute.xlu0 %1405
        %1409 = vset.pattern.permute.xlu0 0
        %1410 = vperm.xlu0 %1409, %v1360
        %v1411 = vpop.permute.xlu0 %1410
        %1414 = vset.pattern.permute.xlu0 0
        %1415 = vperm.xlu0 %1414, %v1361
        %v1416 = vpop.permute.xlu0 %1415
        %1419 = vset.pattern.permute.xlu0 0
        %1420 = vperm.xlu0 %1419, %v1362
        %v1421 = vpop.permute.xlu0 %1420
        %1424 = vset.pattern.permute.xlu0 0
        %1425 = vperm.xlu0 %1424, %v1363
        %v1426 = vpop.permute.xlu0 %1425
        %1429 = vset.pattern.permute.xlu0 0
        %1430 = vperm.xlu0 %1429, %v1364
        %v1431 = vpop.permute.xlu0 %1430
        %1434 = vset.pattern.permute.xlu0 0
        %1435 = vperm.xlu0 %1434, %v1365
        %v1436 = vpop.permute.xlu0 %1435
        %1439 = vset.pattern.permute.xlu0 0
        %1440 = vperm.xlu0 %1439, %v1366
        %v1441 = vpop.permute.xlu0 %1440
        %1444 = vset.pattern.permute.xlu0 0
        %1445 = vperm.xlu0 %1444, %v1367
        %v1446 = vpop.permute.xlu0 %1445
        %v1464 = vunpack.c.l.b16 %v1336
        %v1465 = vunpack.c.h.b16 %v1336
        %v1466 = vunpack.c.l.b16 %v1337
        %v1467 = vunpack.c.h.b16 %v1337
        %v1468 = vunpack.c.l.b16 %v1338
        %v1469 = vunpack.c.h.b16 %v1338
        %v1470 = vunpack.c.l.b16 %v1339
        %v1471 = vunpack.c.h.b16 %v1339
        %v1472 = vunpack.c.l.b16 %v1340
        %v1473 = vunpack.c.h.b16 %v1340
        %v1474 = vunpack.c.l.b16 %v1341
        %v1475 = vunpack.c.h.b16 %v1341
        %v1476 = vunpack.c.l.b16 %v1342
        %v1477 = vunpack.c.h.b16 %v1342
        %v1478 = vunpack.c.l.b16 %v1343
        %v1479 = vunpack.c.h.b16 %v1343
        %v1480 = vunpack.c.l.b16 %v1344
        %v1481 = vunpack.c.h.b16 %v1344
        %v1482 = vunpack.c.l.b16 %v1345
        %v1483 = vunpack.c.h.b16 %v1345
        %v1484 = vunpack.c.l.b16 %v1346
        %v1485 = vunpack.c.h.b16 %v1346
        %v1486 = vunpack.c.l.b16 %v1347
        %v1487 = vunpack.c.h.b16 %v1347
        %v1488 = vunpack.c.l.b16 %v1348
        %v1489 = vunpack.c.h.b16 %v1348
        %v1490 = vunpack.c.l.b16 %v1349
        %v1491 = vunpack.c.h.b16 %v1349
        %v1492 = vunpack.c.l.b16 %v1350
        %v1493 = vunpack.c.h.b16 %v1350
        %v1494 = vunpack.c.l.b16 %v1351
        %v1495 = vunpack.c.h.b16 %v1351
        %v1496 = vpack.c.b16 %v1466, %v1464
        %v1497 = vpack.c.b16 %v1467, %v1465
        %v1498 = vpack.c.b16 %v1470, %v1468
        %v1499 = vpack.c.b16 %v1471, %v1469
        %v1500 = vpack.c.b16 %v1474, %v1472
        %v1501 = vpack.c.b16 %v1475, %v1473
        %v1502 = vpack.c.b16 %v1478, %v1476
        %v1503 = vpack.c.b16 %v1479, %v1477
        %v1504 = vpack.c.b16 %v1482, %v1480
        %v1505 = vpack.c.b16 %v1483, %v1481
        %v1506 = vpack.c.b16 %v1486, %v1484
        %v1507 = vpack.c.b16 %v1487, %v1485
        %v1508 = vpack.c.b16 %v1490, %v1488
        %v1509 = vpack.c.b16 %v1491, %v1489
        %v1510 = vpack.c.b16 %v1494, %v1492
        %v1511 = vpack.c.b16 %v1495, %v1493
        %1528 = vmatprep.subr.bf16.mxu0 %v1305
        %1529 = vmatpush1.bf16.msra.mxu0 %v1304
        %1530 = vmatprep.subr.bf16.mxu0 %v1307
        %1531 = vmatpush1.bf16.msra.mxu0 %v1306
        %1532 = vmatprep.subr.bf16.mxu0 %v1309
        %1533 = vmatpush1.bf16.msra.mxu0 %v1308
        %1534 = vmatprep.subr.bf16.mxu0 %v1311
        %1535 = vmatpush1.bf16.msra.mxu0 %v1310
        %1536 = vmatprep.subr.bf16.mxu0 %v1313
        %1537 = vmatpush1.bf16.msra.mxu0 %v1312
        %1538 = vmatprep.subr.bf16.mxu0 %v1315
        %1539 = vmatpush1.bf16.msra.mxu0 %v1314
        %1540 = vmatprep.subr.bf16.mxu0 %v1317
        %1541 = vmatpush1.bf16.msra.mxu0 %v1316
        %1542 = vmatprep.subr.bf16.mxu0 %v1319
        %1543 = vmatpush1.bf16.msra.mxu0 %v1318
        %1544 = vmatprep.subr.bf16.mxu0 %v1321
        %1545 = vmatpush1.bf16.msra.mxu0 %v1320
        %1546 = vmatprep.subr.bf16.mxu0 %v1323
        %1547 = vmatpush1.bf16.msra.mxu0 %v1322
        %1548 = vmatprep.subr.bf16.mxu0 %v1325
        %1549 = vmatpush1.bf16.msra.mxu0 %v1324
        %1550 = vmatprep.subr.bf16.mxu0 %v1327
        %1551 = vmatpush1.bf16.msra.mxu0 %v1326
        %1552 = vmatprep.subr.bf16.mxu0 %v1329
        %1553 = vmatpush1.bf16.msra.mxu0 %v1328
        %1554 = vmatprep.subr.bf16.mxu0 %v1331
        %1555 = vmatpush1.bf16.msra.mxu0 %v1330
        %1556 = vmatprep.subr.bf16.mxu0 %v1333
        %1557 = vmatpush1.bf16.msra.mxu0 %v1332
        %1558 = vmatprep.subr.bf16.mxu0 %v1335
        %1559 = vmatpush1.bf16.msra.mxu0 %v1334
        %1560 = vmatprep.mubr.bf16.mxu0 %v1497
        %1561 = vmatmul.mubr.bf16.gmra.mrb[0].mxu0 %v1496
        %v1562 = vpop.f32.mrb[0].mxu0
        %v1563 = vadd.f32 %v1371, %v1562
        %v1564 = vpop.f32.mrb[0].mxu0
        %v1565 = vadd.f32 %v1371, %v1564
        %v1566 = vpop.f32.mrb[0].mxu0
        %v1567 = vadd.f32 %v1376, %v1566
        %v1568 = vpop.f32.mrb[0].mxu0
        %v1569 = vadd.f32 %v1376, %v1568
        %1570 = vmatprep.mubr.bf16.mxu0 %v1499
        %1571 = vmatmul.mubr.bf16.gmra.mrb[0].mxu0 %v1498
        %v1572 = vpop.f32.mrb[0].mxu0
        %v1573 = vadd.f32 %v1381, %v1572
        %v1574 = vpop.f32.mrb[0].mxu0
        %v1575 = vadd.f32 %v1381, %v1574
        %v1576 = vpop.f32.mrb[0].mxu0
        %v1577 = vadd.f32 %v1386, %v1576
        %v1578 = vpop.f32.mrb[0].mxu0
        %v1579 = vadd.f32 %v1386, %v1578
        %1580 = vmatprep.mubr.bf16.mxu0 %v1501
        %1581 = vmatmul.mubr.bf16.gmra.mrb[0].mxu0 %v1500
        %v1582 = vpop.f32.mrb[0].mxu0
        %v1583 = vadd.f32 %v1391, %v1582
        %v1584 = vpop.f32.mrb[0].mxu0
        %v1585 = vadd.f32 %v1391, %v1584
        %v1586 = vpop.f32.mrb[0].mxu0
        %v1587 = vadd.f32 %v1396, %v1586
        %v1588 = vpop.f32.mrb[0].mxu0
        %v1589 = vadd.f32 %v1396, %v1588
        %1590 = vmatprep.mubr.bf16.mxu0 %v1503
        %1591 = vmatmul.mubr.bf16.gmra.mrb[0].mxu0 %v1502
        %v1592 = vpop.f32.mrb[0].mxu0
        %v1593 = vadd.f32 %v1401, %v1592
        %v1594 = vpop.f32.mrb[0].mxu0
        %v1595 = vadd.f32 %v1401, %v1594
        %v1596 = vpop.f32.mrb[0].mxu0
        %v1597 = vadd.f32 %v1406, %v1596
        %v1598 = vpop.f32.mrb[0].mxu0
        %v1599 = vadd.f32 %v1406, %v1598
        %1600 = vmatprep.mubr.bf16.mxu0 %v1505
        %1601 = vmatmul.mubr.bf16.gmra.mrb[0].mxu0 %v1504
        %v1602 = vpop.f32.mrb[0].mxu0
        %v1603 = vadd.f32 %v1411, %v1602
        %v1604 = vpop.f32.mrb[0].mxu0
        %v1605 = vadd.f32 %v1411, %v1604
        %v1606 = vpop.f32.mrb[0].mxu0
        %v1607 = vadd.f32 %v1416, %v1606
        %v1608 = vpop.f32.mrb[0].mxu0
        %v1609 = vadd.f32 %v1416, %v1608
        %1610 = vmatprep.mubr.bf16.mxu0 %v1507
        %1611 = vmatmul.mubr.bf16.gmra.mrb[0].mxu0 %v1506
        %v1612 = vpop.f32.mrb[0].mxu0
        %v1613 = vadd.f32 %v1421, %v1612
        %v1614 = vpop.f32.mrb[0].mxu0
        %v1615 = vadd.f32 %v1421, %v1614
        %v1616 = vpop.f32.mrb[0].mxu0
        %v1617 = vadd.f32 %v1426, %v1616
        %v1618 = vpop.f32.mrb[0].mxu0
        %v1619 = vadd.f32 %v1426, %v1618
        %1620 = vmatprep.mubr.bf16.mxu0 %v1509
        %1621 = vmatmul.mubr.bf16.gmra.mrb[0].mxu0 %v1508
        %v1622 = vpop.f32.mrb[0].mxu0
        %v1623 = vadd.f32 %v1431, %v1622
        %v1624 = vpop.f32.mrb[0].mxu0
        %v1625 = vadd.f32 %v1431, %v1624
        %v1626 = vpop.f32.mrb[0].mxu0
        %v1627 = vadd.f32 %v1436, %v1626
        %v1628 = vpop.f32.mrb[0].mxu0
        %v1629 = vadd.f32 %v1436, %v1628
        %1630 = vmatprep.mubr.bf16.mxu0 %v1511
        %1631 = vmatmul.mubr.bf16.gmra.mrb[0].mxu0 %v1510
        %v1632 = vpop.f32.mrb[0].mxu0
        %v1633 = vadd.f32 %v1441, %v1632
        %v1634 = vpop.f32.mrb[0].mxu0
        %v1635 = vadd.f32 %v1441, %v1634
        %v1636 = vpop.f32.mrb[0].mxu0
        %v1637 = vadd.f32 %v1446, %v1636
        %v1638 = vpop.f32.mrb[0].mxu0
        %v1639 = vadd.f32 %v1446, %v1638
        %1640 = vdwg.mxu0
        %v1641 = vmax.f32 %v1563, 0.0
        %v1642 = vmax.f32 %v1565, 0.0
        %v1643 = vmax.f32 %v1567, 0.0
        %v1644 = vmax.f32 %v1569, 0.0
        %v1645 = vmax.f32 %v1573, 0.0
        %v1646 = vmax.f32 %v1575, 0.0
        %v1647 = vmax.f32 %v1577, 0.0
        %v1648 = vmax.f32 %v1579, 0.0
        %v1649 = vmax.f32 %v1583, 0.0
        %v1650 = vmax.f32 %v1585, 0.0
        %v1651 = vmax.f32 %v1587, 0.0
        %v1652 = vmax.f32 %v1589, 0.0
        %v1653 = vmax.f32 %v1593, 0.0
        %v1654 = vmax.f32 %v1595, 0.0
        %v1655 = vmax.f32 %v1597, 0.0
        %v1656 = vmax.f32 %v1599, 0.0
        %v1657 = vmax.f32 %v1603, 0.0
        %v1658 = vmax.f32 %v1605, 0.0
        %v1659 = vmax.f32 %v1607, 0.0
        %v1660 = vmax.f32 %v1609, 0.0
        %v1661 = vmax.f32 %v1613, 0.0
        %v1662 = vmax.f32 %v1615, 0.0
        %v1663 = vmax.f32 %v1617, 0.0
        %v1664 = vmax.f32 %v1619, 0.0
        %v1665 = vmax.f32 %v1623, 0.0
        %v1666 = vmax.f32 %v1625, 0.0
        %v1667 = vmax.f32 %v1627, 0.0
        %v1668 = vmax.f32 %v1629, 0.0
        %v1669 = vmax.f32 %v1633, 0.0
        %v1670 = vmax.f32 %v1635, 0.0
        %v1671 = vmax.f32 %v1637, 0.0
        %v1672 = vmax.f32 %v1639, 0.0
        %v1673 = vpack.c.bf16 %v1643, %v1641
        %v1674 = vpack.c.bf16 %v1644, %v1642
        %v1675 = vpack.c.bf16 %v1647, %v1645
        %v1676 = vpack.c.bf16 %v1648, %v1646
        %v1677 = vpack.c.bf16 %v1651, %v1649
        %v1678 = vpack.c.bf16 %v1652, %v1650
        %v1679 = vpack.c.bf16 %v1655, %v1653
        %v1680 = vpack.c.bf16 %v1656, %v1654
        %v1681 = vpack.c.bf16 %v1659, %v1657
        %v1682 = vpack.c.bf16 %v1660, %v1658
        %v1683 = vpack.c.bf16 %v1663, %v1661
        %v1684 = vpack.c.bf16 %v1664, %v1662
        %v1685 = vpack.c.bf16 %v1667, %v1665
        %v1686 = vpack.c.bf16 %v1668, %v1666
        %v1687 = vpack.c.bf16 %v1671, %v1669
        %v1688 = vpack.c.bf16 %v1672, %v1670
        %v1689 = vld [vmem:[%s7] sm:$0xf]
        %v1690 = vld [vmem:[%s8] sm:$0xff]
        %1692 = vset.pattern.permute.xlu0 0
        %1693 = vperm.xlu0 %1692, %v1690
        %v1694 = vpop.permute.xlu0 %1693
        %1696 = vmatprep.subr.bf16.mxu0 %v1674
        %1697 = vmatpush1.bf16.msra.mxu0 %v1673
        %1698 = vmatprep.subr.bf16.mxu0 %v1676
        %1699 = vmatpush1.bf16.msra.mxu0 %v1675
        %1700 = vmatprep.subr.bf16.mxu0 %v1678
        %1701 = vmatpush1.bf16.msra.mxu0 %v1677
        %1702 = vmatprep.subr.bf16.mxu0 %v1680
        %1703 = vmatpush1.bf16.msra.mxu0 %v1679
        %1704 = vmatprep.subr.bf16.mxu0 %v1682
        %1705 = vmatpush1.bf16.msra.mxu0 %v1681
        %1706 = vmatprep.subr.bf16.mxu0 %v1684
        %1707 = vmatpush1.bf16.msra.mxu0 %v1683
        %1708 = vmatprep.subr.bf16.mxu0 %v1686
        %1709 = vmatpush1.bf16.msra.mxu0 %v1685
        %1710 = vmatprep.subr.bf16.mxu0 %v1688
        %1711 = vmatpush1.bf16.msra.mxu0 %v1687
        %1712 = vmatprep.subr.bf16.mxu0 0
        %1713 = vmatpush1.bf16.msra.mxu0 0
        %1714 = vmatprep.subr.bf16.mxu0 0
        %1715 = vmatpush1.bf16.msra.mxu0 0
        %1716 = vmatprep.subr.bf16.mxu0 0
        %1717 = vmatpush1.bf16.msra.mxu0 0
        %1718 = vmatprep.subr.bf16.mxu0 0
        %1719 = vmatpush1.bf16.msra.mxu0 0
        %1720 = vmatprep.subr.bf16.mxu0 0
        %1721 = vmatpush1.bf16.msra.mxu0 0
        %1722 = vmatprep.subr.bf16.mxu0 0
        %1723 = vmatpush1.bf16.msra.mxu0 0
        %1724 = vmatprep.subr.bf16.mxu0 0
        %1725 = vmatpush1.bf16.msra.mxu0 0
        %1726 = vmatprep.subr.bf16.mxu0 0
        %1727 = vmatpush1.bf16.msra.mxu0 0
        %1728 = vmatprep.mubr.bf16.mxu0 0
        %1729 = vmatmul.mubr.bf16.gmra.mrb[0].mxu0 %v1689
        %v1730 = vpop.f32.mrb[0].mxu0
        %v1731 = vadd.f32 %v1694, %v1730
        %v1732 = vpop.f32.mrb[0].mxu0
        %v1733 = vadd.f32 %v1694, %v1732
        %v1734 = vpop.f32.mrb[0].mxu0
        %v1735 = vpop.f32.mrb[0].mxu0
        %1736 = vdwg.mxu0
        %1737 = vst [vmem:[%s334] sm:$0xff] %v1731
        %1738 = vst [vmem:[%s334 + $0x8] sm:$0xff] %v1733
        %s1739 = sand.u32 %s222, 1
        %s1740 = sand.u32 %s222, 1
        %s1741 = smul.addr %s1740, 16
        %s1742 = scalar_lea.vmem [#allocation2], %s1741
        // Predicated region
        $region57: #{light_probe_nn.1} parent=55 // pred_check
          %p1743 = pneg %p232
        $region58: #{light_probe_nn.1} parent=55 // pred_check_branch
          %1745 = sbr.rel (%p1743) target = $region60
        $region59: #{light_probe_nn.1} parent=55 // pred_region
          %s1746 = smul.u32 2, %s20
          %s1747 = ssub.s32 3, %s1746
          %p1748 = scmp.lt.s32.totalorder %s1747, 2
          %s1749 = scalar_select %p1748, %s1747, 2
          %s1750 = smul.u32 128, %s1749
          %p1751 = scmp.ne.s32.totalorder 0, %s1750
          %s1752 = smul.addr %s1746, 8
          %s1753 = scalar_lea.vmem %s9, %s1752
          %s1754 = smul.u32 %s1749, 8
          // Predicated region
          $region61: #{light_probe_nn.1} parent=59 // pred_check
            %p1755 = pneg %p1751
          $region62: #{light_probe_nn.1} parent=59 // pred_check_branch
            %1757 = sbr.rel (%p1755) target = $region64
          $region63: #{light_probe_nn.1} parent=59 // pred_region
            %p1758 = scmp.lt.u32.totalorder %s1754, 8
            %p1759 = pneg %p1758
            // Predicated region
            $region65: #{light_probe_nn.1} parent=63 // pred_check
              _
            $region66: #{light_probe_nn.1} parent=63 // pred_check_branch
              %1761 = sbr.rel (%p1758) target = $region68
            $region67: #{light_probe_nn.1} parent=63 // pred_region
              %s1776 = sand.u32 %s1754, 7
              %p1777 = scmp.eq.s32.totalorder %s1776, 0
              // Predicated region
              $region80: #{light_probe_nn.1} parent=67 // pred_check
                %p1778 = pneg %p1777
              $region81: #{light_probe_nn.1} parent=67 // pred_check_branch
                %1780 = sbr.rel (%p1778) target = $region83
              $region82: #{light_probe_nn.1} parent=67 // pred_region
                %s1781 = sshrl.u32 %s1754, 3
                %s1782 = sshrl.u32 %s1781, 6
                // While loop
                $region84: #{light_probe_nn.1} parent=82 // loop_pre_header
                  _
                $region85: #{light_probe_nn.1} parent=82 // loop_header
                  %s1786 = sphi 0, %s1788
                  %p1787 = scmp.ge.s32.totalorder %s1786, %s1782
                  %s1791 = sphi 0, %s1924
                  %s1792 = sphi %s1742, %s1927
                  %s1793 = sphi %s1753, %s1928
                $region86: #{light_probe_nn.1} parent=82 // loop_header_branch
                  %1790 = sbr.rel (%p1787) target = $region90
                $region87: #{light_probe_nn.1} parent=82 // loop_body
                  %v1794 = vld [vmem:[%s1792] sm:$0xff]
                  %1795 = vst [vmem:[%s1793] sm:$0xff] %v1794
                  %v1796 = vld [vmem:[%s1792 + $0x8] sm:$0xff]
                  %1797 = vst [vmem:[%s1793 + $0x8] sm:$0xff] %v1796
                  %v1798 = vld [vmem:[%s1792 + $0x10] sm:$0xff]
                  %1799 = vst [vmem:[%s1793 + $0x10] sm:$0xff] %v1798
                  %v1800 = vld [vmem:[%s1792 + $0x18] sm:$0xff]
                  %1801 = vst [vmem:[%s1793 + $0x18] sm:$0xff] %v1800
                  %v1802 = vld [vmem:[%s1792 + $0x20] sm:$0xff]
                  %1803 = vst [vmem:[%s1793 + $0x20] sm:$0xff] %v1802
                  %v1804 = vld [vmem:[%s1792 + $0x28] sm:$0xff]
                  %1805 = vst [vmem:[%s1793 + $0x28] sm:$0xff] %v1804
                  %v1806 = vld [vmem:[%s1792 + $0x30] sm:$0xff]
                  %1807 = vst [vmem:[%s1793 + $0x30] sm:$0xff] %v1806
                  %v1808 = vld [vmem:[%s1792 + $0x38] sm:$0xff]
                  %1809 = vst [vmem:[%s1793 + $0x38] sm:$0xff] %v1808
                  %v1810 = vld [vmem:[%s1792 + $0x40] sm:$0xff]
                  %1811 = vst [vmem:[%s1793 + $0x40] sm:$0xff] %v1810
                  %v1812 = vld [vmem:[%s1792 + $0x48] sm:$0xff]
                  %1813 = vst [vmem:[%s1793 + $0x48] sm:$0xff] %v1812
                  %v1814 = vld [vmem:[%s1792 + $0x50] sm:$0xff]
                  %1815 = vst [vmem:[%s1793 + $0x50] sm:$0xff] %v1814
                  %v1816 = vld [vmem:[%s1792 + $0x58] sm:$0xff]
                  %1817 = vst [vmem:[%s1793 + $0x58] sm:$0xff] %v1816
                  %v1818 = vld [vmem:[%s1792 + $0x60] sm:$0xff]
                  %1819 = vst [vmem:[%s1793 + $0x60] sm:$0xff] %v1818
                  %v1820 = vld [vmem:[%s1792 + $0x68] sm:$0xff]
                  %1821 = vst [vmem:[%s1793 + $0x68] sm:$0xff] %v1820
                  %v1822 = vld [vmem:[%s1792 + $0x70] sm:$0xff]
                  %1823 = vst [vmem:[%s1793 + $0x70] sm:$0xff] %v1822
                  %v1824 = vld [vmem:[%s1792 + $0x78] sm:$0xff]
                  %1825 = vst [vmem:[%s1793 + $0x78] sm:$0xff] %v1824
                  %v1826 = vld [vmem:[%s1792 + $0x80] sm:$0xff]
                  %1827 = vst [vmem:[%s1793 + $0x80] sm:$0xff] %v1826
                  %v1828 = vld [vmem:[%s1792 + $0x88] sm:$0xff]
                  %1829 = vst [vmem:[%s1793 + $0x88] sm:$0xff] %v1828
                  %v1830 = vld [vmem:[%s1792 + $0x90] sm:$0xff]
                  %1831 = vst [vmem:[%s1793 + $0x90] sm:$0xff] %v1830
                  %v1832 = vld [vmem:[%s1792 + $0x98] sm:$0xff]
                  %1833 = vst [vmem:[%s1793 + $0x98] sm:$0xff] %v1832
                  %v1834 = vld [vmem:[%s1792 + $0xa0] sm:$0xff]
                  %1835 = vst [vmem:[%s1793 + $0xa0] sm:$0xff] %v1834
                  %v1836 = vld [vmem:[%s1792 + $0xa8] sm:$0xff]
                  %1837 = vst [vmem:[%s1793 + $0xa8] sm:$0xff] %v1836
                  %v1838 = vld [vmem:[%s1792 + $0xb0] sm:$0xff]
                  %1839 = vst [vmem:[%s1793 + $0xb0] sm:$0xff] %v1838
                  %v1840 = vld [vmem:[%s1792 + $0xb8] sm:$0xff]
                  %1841 = vst [vmem:[%s1793 + $0xb8] sm:$0xff] %v1840
                  %v1842 = vld [vmem:[%s1792 + $0xc0] sm:$0xff]
                  %1843 = vst [vmem:[%s1793 + $0xc0] sm:$0xff] %v1842
                  %v1844 = vld [vmem:[%s1792 + $0xc8] sm:$0xff]
                  %1845 = vst [vmem:[%s1793 + $0xc8] sm:$0xff] %v1844
                  %v1846 = vld [vmem:[%s1792 + $0xd0] sm:$0xff]
                  %1847 = vst [vmem:[%s1793 + $0xd0] sm:$0xff] %v1846
                  %v1848 = vld [vmem:[%s1792 + $0xd8] sm:$0xff]
                  %1849 = vst [vmem:[%s1793 + $0xd8] sm:$0xff] %v1848
                  %v1850 = vld [vmem:[%s1792 + $0xe0] sm:$0xff]
                  %1851 = vst [vmem:[%s1793 + $0xe0] sm:$0xff] %v1850
                  %v1852 = vld [vmem:[%s1792 + $0xe8] sm:$0xff]
                  %1853 = vst [vmem:[%s1793 + $0xe8] sm:$0xff] %v1852
                  %v1854 = vld [vmem:[%s1792 + $0xf0] sm:$0xff]
                  %1855 = vst [vmem:[%s1793 + $0xf0] sm:$0xff] %v1854
                  %v1856 = vld [vmem:[%s1792 + $0xf8] sm:$0xff]
                  %1857 = vst [vmem:[%s1793 + $0xf8] sm:$0xff] %v1856
                  %v1858 = vld [vmem:[%s1792 + $0x100] sm:$0xff]
                  %1859 = vst [vmem:[%s1793 + $0x100] sm:$0xff] %v1858
                  %v1860 = vld [vmem:[%s1792 + $0x108] sm:$0xff]
                  %1861 = vst [vmem:[%s1793 + $0x108] sm:$0xff] %v1860
                  %v1862 = vld [vmem:[%s1792 + $0x110] sm:$0xff]
                  %1863 = vst [vmem:[%s1793 + $0x110] sm:$0xff] %v1862
                  %v1864 = vld [vmem:[%s1792 + $0x118] sm:$0xff]
                  %1865 = vst [vmem:[%s1793 + $0x118] sm:$0xff] %v1864
                  %v1866 = vld [vmem:[%s1792 + $0x120] sm:$0xff]
                  %1867 = vst [vmem:[%s1793 + $0x120] sm:$0xff] %v1866
                  %v1868 = vld [vmem:[%s1792 + $0x128] sm:$0xff]
                  %1869 = vst [vmem:[%s1793 + $0x128] sm:$0xff] %v1868
                  %v1870 = vld [vmem:[%s1792 + $0x130] sm:$0xff]
                  %1871 = vst [vmem:[%s1793 + $0x130] sm:$0xff] %v1870
                  %v1872 = vld [vmem:[%s1792 + $0x138] sm:$0xff]
                  %1873 = vst [vmem:[%s1793 + $0x138] sm:$0xff] %v1872
                  %v1874 = vld [vmem:[%s1792 + $0x140] sm:$0xff]
                  %1875 = vst [vmem:[%s1793 + $0x140] sm:$0xff] %v1874
                  %v1876 = vld [vmem:[%s1792 + $0x148] sm:$0xff]
                  %1877 = vst [vmem:[%s1793 + $0x148] sm:$0xff] %v1876
                  %v1878 = vld [vmem:[%s1792 + $0x150] sm:$0xff]
                  %1879 = vst [vmem:[%s1793 + $0x150] sm:$0xff] %v1878
                  %v1880 = vld [vmem:[%s1792 + $0x158] sm:$0xff]
                  %1881 = vst [vmem:[%s1793 + $0x158] sm:$0xff] %v1880
                  %v1882 = vld [vmem:[%s1792 + $0x160] sm:$0xff]
                  %1883 = vst [vmem:[%s1793 + $0x160] sm:$0xff] %v1882
                  %v1884 = vld [vmem:[%s1792 + $0x168] sm:$0xff]
                  %1885 = vst [vmem:[%s1793 + $0x168] sm:$0xff] %v1884
                  %v1886 = vld [vmem:[%s1792 + $0x170] sm:$0xff]
                  %1887 = vst [vmem:[%s1793 + $0x170] sm:$0xff] %v1886
                  %v1888 = vld [vmem:[%s1792 + $0x178] sm:$0xff]
                  %1889 = vst [vmem:[%s1793 + $0x178] sm:$0xff] %v1888
                  %v1890 = vld [vmem:[%s1792 + $0x180] sm:$0xff]
                  %1891 = vst [vmem:[%s1793 + $0x180] sm:$0xff] %v1890
                  %v1892 = vld [vmem:[%s1792 + $0x188] sm:$0xff]
                  %1893 = vst [vmem:[%s1793 + $0x188] sm:$0xff] %v1892
                  %v1894 = vld [vmem:[%s1792 + $0x190] sm:$0xff]
                  %1895 = vst [vmem:[%s1793 + $0x190] sm:$0xff] %v1894
                  %v1896 = vld [vmem:[%s1792 + $0x198] sm:$0xff]
                  %1897 = vst [vmem:[%s1793 + $0x198] sm:$0xff] %v1896
                  %v1898 = vld [vmem:[%s1792 + $0x1a0] sm:$0xff]
                  %1899 = vst [vmem:[%s1793 + $0x1a0] sm:$0xff] %v1898
                  %v1900 = vld [vmem:[%s1792 + $0x1a8] sm:$0xff]
                  %1901 = vst [vmem:[%s1793 + $0x1a8] sm:$0xff] %v1900
                  %v1902 = vld [vmem:[%s1792 + $0x1b0] sm:$0xff]
                  %1903 = vst [vmem:[%s1793 + $0x1b0] sm:$0xff] %v1902
                  %v1904 = vld [vmem:[%s1792 + $0x1b8] sm:$0xff]
                  %1905 = vst [vmem:[%s1793 + $0x1b8] sm:$0xff] %v1904
                  %v1906 = vld [vmem:[%s1792 + $0x1c0] sm:$0xff]
                  %1907 = vst [vmem:[%s1793 + $0x1c0] sm:$0xff] %v1906
                  %v1908 = vld [vmem:[%s1792 + $0x1c8] sm:$0xff]
                  %1909 = vst [vmem:[%s1793 + $0x1c8] sm:$0xff] %v1908
                  %v1910 = vld [vmem:[%s1792 + $0x1d0] sm:$0xff]
                  %1911 = vst [vmem:[%s1793 + $0x1d0] sm:$0xff] %v1910
                  %v1912 = vld [vmem:[%s1792 + $0x1d8] sm:$0xff]
                  %1913 = vst [vmem:[%s1793 + $0x1d8] sm:$0xff] %v1912
                  %v1914 = vld [vmem:[%s1792 + $0x1e0] sm:$0xff]
                  %1915 = vst [vmem:[%s1793 + $0x1e0] sm:$0xff] %v1914
                  %v1916 = vld [vmem:[%s1792 + $0x1e8] sm:$0xff]
                  %1917 = vst [vmem:[%s1793 + $0x1e8] sm:$0xff] %v1916
                  %v1918 = vld [vmem:[%s1792 + $0x1f0] sm:$0xff]
                  %1919 = vst [vmem:[%s1793 + $0x1f0] sm:$0xff] %v1918
                  %v1920 = vld [vmem:[%s1792 + $0x1f8] sm:$0xff]
                  %1921 = vst [vmem:[%s1793 + $0x1f8] sm:$0xff] %v1920
                  %s1922 = sadd.s32 1, %s1791
                  %p1923 = scmp.ge.s32.totalorder %s1922, %s1782
                  %s1924 = scalar_select %p1923, 0, %s1922
                  %s1925 = smul.u32 %s1924, 512
                  %s1926 = smul.u32 %s1924, 512
                  %s1927 = scalar_lea.vmem %s1742, %s1925 [#allocation2]
                  %s1928 = scalar_lea.vmem %s1753, %s1926
                $region88: #{light_probe_nn.1} parent=82 // loop_footer
                  %s1788 = sadd.s32 %s1786, 1
                $region89: #{light_probe_nn.1} parent=82 // loop_footer_branch
                  %1785 = sbr.rel target = $region85
                $region90: #{light_probe_nn.1} parent=82 // loop_exit
                  _
                %s1929 = sshrl.u32 %s1781, 6
                %s1930 = sand.u32 %s1781, 63
                %s1931 = smul.u32 %s1929, 64
                %s1932 = smul.u32 128, %s1931
                %s1933 = sshra.s32 %s1932, 4
                %s1934 = scalar_lea.vmem %s1742, %s1933 [#allocation2]
                %s1935 = smul.u32 128, %s1931
                %s1936 = sshra.s32 %s1935, 4
                %s1937 = scalar_lea.vmem %s1753, %s1936
                // While loop
                $region91: #{light_probe_nn.1} parent=82 // loop_pre_header
                  _
                $region92: #{light_probe_nn.1} parent=82 // loop_header
                  %s1941 = sphi 0, %s1943
                  %p1942 = scmp.ge.s32.totalorder %s1941, %s1930
                  %s1946 = sphi 0, %s1953
                  %s1947 = sphi %s1934, %s1956
                  %s1948 = sphi %s1937, %s1957
                $region93: #{light_probe_nn.1} parent=82 // loop_header_branch
                  %1945 = sbr.rel (%p1942) target = $region97
                $region94: #{light_probe_nn.1} parent=82 // loop_body
                  %v1949 = vld [vmem:[%s1947] sm:$0xff]
                  %1950 = vst [vmem:[%s1948] sm:$0xff] %v1949
                  %s1951 = sadd.s32 1, %s1946
                  %p1952 = scmp.ge.s32.totalorder %s1951, %s1930
                  %s1953 = scalar_select %p1952, 0, %s1951
                  %s1954 = smul.u32 %s1953, 8
                  %s1955 = smul.u32 %s1953, 8
                  %s1956 = scalar_lea.vmem %s1934, %s1954 [#allocation2]
                  %s1957 = scalar_lea.vmem %s1937, %s1955
                $region95: #{light_probe_nn.1} parent=82 // loop_footer
                  %s1943 = sadd.s32 %s1941, 1
                $region96: #{light_probe_nn.1} parent=82 // loop_footer_branch
                  %1940 = sbr.rel target = $region92
                $region97: #{light_probe_nn.1} parent=82 // loop_exit
                  _
              $region83: #{light_probe_nn.1} parent=67 // pred_fallthru
                _
              %p1958 = pneg %p1777
              // Predicated region
              $region98: #{light_probe_nn.1} parent=67 // pred_check
                _
              $region99: #{light_probe_nn.1} parent=67 // pred_check_branch
                %1960 = sbr.rel (%p1777) target = $region101
              $region100: #{light_probe_nn.1} parent=67 // pred_region
                %s1961 = sand.u32 %s1754, 7
                %s1962 = ssub.s32 %s1754, %s1961
                %s1963 = scalar_lea.vmem %s1742, %s1962 [#allocation2]
                %s1964 = ssub.s32 %s1754, %s1961
                %s1965 = scalar_lea.vmem %s1753, %s1964
                %s1966 = sshrl.u32 %s1754, 3
                %s1967 = sshrl.u32 %s1966, 6
                // While loop
                $region102: #{light_probe_nn.1} parent=100 // loop_pre_header
                  _
                $region103: #{light_probe_nn.1} parent=100 // loop_header
                  %s1971 = sphi 0, %s1973
                  %p1972 = scmp.ge.s32.totalorder %s1971, %s1967
                  %s1976 = sphi 0, %s2109
                  %s1977 = sphi %s1742, %s2112
                  %s1978 = sphi %s1753, %s2113
                $region104: #{light_probe_nn.1} parent=100 // loop_header_branch
                  %1975 = sbr.rel (%p1972) target = $region108
                $region105: #{light_probe_nn.1} parent=100 // loop_body
                  %v1979 = vld [vmem:[%s1977] sm:$0xff]
                  %1980 = vst [vmem:[%s1978] sm:$0xff] %v1979
                  %v1981 = vld [vmem:[%s1977 + $0x8] sm:$0xff]
                  %1982 = vst [vmem:[%s1978 + $0x8] sm:$0xff] %v1981
                  %v1983 = vld [vmem:[%s1977 + $0x10] sm:$0xff]
                  %1984 = vst [vmem:[%s1978 + $0x10] sm:$0xff] %v1983
                  %v1985 = vld [vmem:[%s1977 + $0x18] sm:$0xff]
                  %1986 = vst [vmem:[%s1978 + $0x18] sm:$0xff] %v1985
                  %v1987 = vld [vmem:[%s1977 + $0x20] sm:$0xff]
                  %1988 = vst [vmem:[%s1978 + $0x20] sm:$0xff] %v1987
                  %v1989 = vld [vmem:[%s1977 + $0x28] sm:$0xff]
                  %1990 = vst [vmem:[%s1978 + $0x28] sm:$0xff] %v1989
                  %v1991 = vld [vmem:[%s1977 + $0x30] sm:$0xff]
                  %1992 = vst [vmem:[%s1978 + $0x30] sm:$0xff] %v1991
                  %v1993 = vld [vmem:[%s1977 + $0x38] sm:$0xff]
                  %1994 = vst [vmem:[%s1978 + $0x38] sm:$0xff] %v1993
                  %v1995 = vld [vmem:[%s1977 + $0x40] sm:$0xff]
                  %1996 = vst [vmem:[%s1978 + $0x40] sm:$0xff] %v1995
                  %v1997 = vld [vmem:[%s1977 + $0x48] sm:$0xff]
                  %1998 = vst [vmem:[%s1978 + $0x48] sm:$0xff] %v1997
                  %v1999 = vld [vmem:[%s1977 + $0x50] sm:$0xff]
                  %2000 = vst [vmem:[%s1978 + $0x50] sm:$0xff] %v1999
                  %v2001 = vld [vmem:[%s1977 + $0x58] sm:$0xff]
                  %2002 = vst [vmem:[%s1978 + $0x58] sm:$0xff] %v2001
                  %v2003 = vld [vmem:[%s1977 + $0x60] sm:$0xff]
                  %2004 = vst [vmem:[%s1978 + $0x60] sm:$0xff] %v2003
                  %v2005 = vld [vmem:[%s1977 + $0x68] sm:$0xff]
                  %2006 = vst [vmem:[%s1978 + $0x68] sm:$0xff] %v2005
                  %v2007 = vld [vmem:[%s1977 + $0x70] sm:$0xff]
                  %2008 = vst [vmem:[%s1978 + $0x70] sm:$0xff] %v2007
                  %v2009 = vld [vmem:[%s1977 + $0x78] sm:$0xff]
                  %2010 = vst [vmem:[%s1978 + $0x78] sm:$0xff] %v2009
                  %v2011 = vld [vmem:[%s1977 + $0x80] sm:$0xff]
                  %2012 = vst [vmem:[%s1978 + $0x80] sm:$0xff] %v2011
                  %v2013 = vld [vmem:[%s1977 + $0x88] sm:$0xff]
                  %2014 = vst [vmem:[%s1978 + $0x88] sm:$0xff] %v2013
                  %v2015 = vld [vmem:[%s1977 + $0x90] sm:$0xff]
                  %2016 = vst [vmem:[%s1978 + $0x90] sm:$0xff] %v2015
                  %v2017 = vld [vmem:[%s1977 + $0x98] sm:$0xff]
                  %2018 = vst [vmem:[%s1978 + $0x98] sm:$0xff] %v2017
                  %v2019 = vld [vmem:[%s1977 + $0xa0] sm:$0xff]
                  %2020 = vst [vmem:[%s1978 + $0xa0] sm:$0xff] %v2019
                  %v2021 = vld [vmem:[%s1977 + $0xa8] sm:$0xff]
                  %2022 = vst [vmem:[%s1978 + $0xa8] sm:$0xff] %v2021
                  %v2023 = vld [vmem:[%s1977 + $0xb0] sm:$0xff]
                  %2024 = vst [vmem:[%s1978 + $0xb0] sm:$0xff] %v2023
                  %v2025 = vld [vmem:[%s1977 + $0xb8] sm:$0xff]
                  %2026 = vst [vmem:[%s1978 + $0xb8] sm:$0xff] %v2025
                  %v2027 = vld [vmem:[%s1977 + $0xc0] sm:$0xff]
                  %2028 = vst [vmem:[%s1978 + $0xc0] sm:$0xff] %v2027
                  %v2029 = vld [vmem:[%s1977 + $0xc8] sm:$0xff]
                  %2030 = vst [vmem:[%s1978 + $0xc8] sm:$0xff] %v2029
                  %v2031 = vld [vmem:[%s1977 + $0xd0] sm:$0xff]
                  %2032 = vst [vmem:[%s1978 + $0xd0] sm:$0xff] %v2031
                  %v2033 = vld [vmem:[%s1977 + $0xd8] sm:$0xff]
                  %2034 = vst [vmem:[%s1978 + $0xd8] sm:$0xff] %v2033
                  %v2035 = vld [vmem:[%s1977 + $0xe0] sm:$0xff]
                  %2036 = vst [vmem:[%s1978 + $0xe0] sm:$0xff] %v2035
                  %v2037 = vld [vmem:[%s1977 + $0xe8] sm:$0xff]
                  %2038 = vst [vmem:[%s1978 + $0xe8] sm:$0xff] %v2037
                  %v2039 = vld [vmem:[%s1977 + $0xf0] sm:$0xff]
                  %2040 = vst [vmem:[%s1978 + $0xf0] sm:$0xff] %v2039
                  %v2041 = vld [vmem:[%s1977 + $0xf8] sm:$0xff]
                  %2042 = vst [vmem:[%s1978 + $0xf8] sm:$0xff] %v2041
                  %v2043 = vld [vmem:[%s1977 + $0x100] sm:$0xff]
                  %2044 = vst [vmem:[%s1978 + $0x100] sm:$0xff] %v2043
                  %v2045 = vld [vmem:[%s1977 + $0x108] sm:$0xff]
                  %2046 = vst [vmem:[%s1978 + $0x108] sm:$0xff] %v2045
                  %v2047 = vld [vmem:[%s1977 + $0x110] sm:$0xff]
                  %2048 = vst [vmem:[%s1978 + $0x110] sm:$0xff] %v2047
                  %v2049 = vld [vmem:[%s1977 + $0x118] sm:$0xff]
                  %2050 = vst [vmem:[%s1978 + $0x118] sm:$0xff] %v2049
                  %v2051 = vld [vmem:[%s1977 + $0x120] sm:$0xff]
                  %2052 = vst [vmem:[%s1978 + $0x120] sm:$0xff] %v2051
                  %v2053 = vld [vmem:[%s1977 + $0x128] sm:$0xff]
                  %2054 = vst [vmem:[%s1978 + $0x128] sm:$0xff] %v2053
                  %v2055 = vld [vmem:[%s1977 + $0x130] sm:$0xff]
                  %2056 = vst [vmem:[%s1978 + $0x130] sm:$0xff] %v2055
                  %v2057 = vld [vmem:[%s1977 + $0x138] sm:$0xff]
                  %2058 = vst [vmem:[%s1978 + $0x138] sm:$0xff] %v2057
                  %v2059 = vld [vmem:[%s1977 + $0x140] sm:$0xff]
                  %2060 = vst [vmem:[%s1978 + $0x140] sm:$0xff] %v2059
                  %v2061 = vld [vmem:[%s1977 + $0x148] sm:$0xff]
                  %2062 = vst [vmem:[%s1978 + $0x148] sm:$0xff] %v2061
                  %v2063 = vld [vmem:[%s1977 + $0x150] sm:$0xff]
                  %2064 = vst [vmem:[%s1978 + $0x150] sm:$0xff] %v2063
                  %v2065 = vld [vmem:[%s1977 + $0x158] sm:$0xff]
                  %2066 = vst [vmem:[%s1978 + $0x158] sm:$0xff] %v2065
                  %v2067 = vld [vmem:[%s1977 + $0x160] sm:$0xff]
                  %2068 = vst [vmem:[%s1978 + $0x160] sm:$0xff] %v2067
                  %v2069 = vld [vmem:[%s1977 + $0x168] sm:$0xff]
                  %2070 = vst [vmem:[%s1978 + $0x168] sm:$0xff] %v2069
                  %v2071 = vld [vmem:[%s1977 + $0x170] sm:$0xff]
                  %2072 = vst [vmem:[%s1978 + $0x170] sm:$0xff] %v2071
                  %v2073 = vld [vmem:[%s1977 + $0x178] sm:$0xff]
                  %2074 = vst [vmem:[%s1978 + $0x178] sm:$0xff] %v2073
                  %v2075 = vld [vmem:[%s1977 + $0x180] sm:$0xff]
                  %2076 = vst [vmem:[%s1978 + $0x180] sm:$0xff] %v2075
                  %v2077 = vld [vmem:[%s1977 + $0x188] sm:$0xff]
                  %2078 = vst [vmem:[%s1978 + $0x188] sm:$0xff] %v2077
                  %v2079 = vld [vmem:[%s1977 + $0x190] sm:$0xff]
                  %2080 = vst [vmem:[%s1978 + $0x190] sm:$0xff] %v2079
                  %v2081 = vld [vmem:[%s1977 + $0x198] sm:$0xff]
                  %2082 = vst [vmem:[%s1978 + $0x198] sm:$0xff] %v2081
                  %v2083 = vld [vmem:[%s1977 + $0x1a0] sm:$0xff]
                  %2084 = vst [vmem:[%s1978 + $0x1a0] sm:$0xff] %v2083
                  %v2085 = vld [vmem:[%s1977 + $0x1a8] sm:$0xff]
                  %2086 = vst [vmem:[%s1978 + $0x1a8] sm:$0xff] %v2085
                  %v2087 = vld [vmem:[%s1977 + $0x1b0] sm:$0xff]
                  %2088 = vst [vmem:[%s1978 + $0x1b0] sm:$0xff] %v2087
                  %v2089 = vld [vmem:[%s1977 + $0x1b8] sm:$0xff]
                  %2090 = vst [vmem:[%s1978 + $0x1b8] sm:$0xff] %v2089
                  %v2091 = vld [vmem:[%s1977 + $0x1c0] sm:$0xff]
                  %2092 = vst [vmem:[%s1978 + $0x1c0] sm:$0xff] %v2091
                  %v2093 = vld [vmem:[%s1977 + $0x1c8] sm:$0xff]
                  %2094 = vst [vmem:[%s1978 + $0x1c8] sm:$0xff] %v2093
                  %v2095 = vld [vmem:[%s1977 + $0x1d0] sm:$0xff]
                  %2096 = vst [vmem:[%s1978 + $0x1d0] sm:$0xff] %v2095
                  %v2097 = vld [vmem:[%s1977 + $0x1d8] sm:$0xff]
                  %2098 = vst [vmem:[%s1978 + $0x1d8] sm:$0xff] %v2097
                  %v2099 = vld [vmem:[%s1977 + $0x1e0] sm:$0xff]
                  %2100 = vst [vmem:[%s1978 + $0x1e0] sm:$0xff] %v2099
                  %v2101 = vld [vmem:[%s1977 + $0x1e8] sm:$0xff]
                  %2102 = vst [vmem:[%s1978 + $0x1e8] sm:$0xff] %v2101
                  %v2103 = vld [vmem:[%s1977 + $0x1f0] sm:$0xff]
                  %2104 = vst [vmem:[%s1978 + $0x1f0] sm:$0xff] %v2103
                  %v2105 = vld [vmem:[%s1977 + $0x1f8] sm:$0xff]
                  %2106 = vst [vmem:[%s1978 + $0x1f8] sm:$0xff] %v2105
                  %s2107 = sadd.s32 1, %s1976
                  %p2108 = scmp.ge.s32.totalorder %s2107, %s1967
                  %s2109 = scalar_select %p2108, 0, %s2107
                  %s2110 = smul.u32 %s2109, 512
                  %s2111 = smul.u32 %s2109, 512
                  %s2112 = scalar_lea.vmem %s1742, %s2110 [#allocation2]
                  %s2113 = scalar_lea.vmem %s1753, %s2111
                $region106: #{light_probe_nn.1} parent=100 // loop_footer
                  %s1973 = sadd.s32 %s1971, 1
                $region107: #{light_probe_nn.1} parent=100 // loop_footer_branch
                  %1970 = sbr.rel target = $region103
                $region108: #{light_probe_nn.1} parent=100 // loop_exit
                  _
                %s2114 = sshrl.u32 %s1966, 6
                %s2115 = sand.u32 %s1966, 63
                %s2116 = smul.u32 %s2114, 64
                %s2117 = smul.u32 128, %s2116
                %s2118 = sshra.s32 %s2117, 4
                %s2119 = scalar_lea.vmem %s1742, %s2118 [#allocation2]
                %s2120 = smul.u32 128, %s2116
                %s2121 = sshra.s32 %s2120, 4
                %s2122 = scalar_lea.vmem %s1753, %s2121
                // While loop
                $region109: #{light_probe_nn.1} parent=100 // loop_pre_header
                  _
                $region110: #{light_probe_nn.1} parent=100 // loop_header
                  %s2126 = sphi 0, %s2128
                  %p2127 = scmp.ge.s32.totalorder %s2126, %s2115
                  %s2131 = sphi 0, %s2138
                  %s2132 = sphi %s2119, %s2141
                  %s2133 = sphi %s2122, %s2142
                $region111: #{light_probe_nn.1} parent=100 // loop_header_branch
                  %2130 = sbr.rel (%p2127) target = $region115
                $region112: #{light_probe_nn.1} parent=100 // loop_body
                  %v2134 = vld [vmem:[%s2132] sm:$0xff]
                  %2135 = vst [vmem:[%s2133] sm:$0xff] %v2134
                  %s2136 = sadd.s32 1, %s2131
                  %p2137 = scmp.ge.s32.totalorder %s2136, %s2115
                  %s2138 = scalar_select %p2137, 0, %s2136
                  %s2139 = smul.u32 %s2138, 8
                  %s2140 = smul.u32 %s2138, 8
                  %s2141 = scalar_lea.vmem %s2119, %s2139 [#allocation2]
                  %s2142 = scalar_lea.vmem %s2122, %s2140
                $region113: #{light_probe_nn.1} parent=100 // loop_footer
                  %s2128 = sadd.s32 %s2126, 1
                $region114: #{light_probe_nn.1} parent=100 // loop_footer_branch
                  %2125 = sbr.rel target = $region110
                $region115: #{light_probe_nn.1} parent=100 // loop_exit
                  _
                %s2143 = sshllo.u32 0, %s1961
                loop: start=0, step=1, limit=1
                $region116: #{light_probe_nn.1} parent=100 // loop_pre_header
                  _
                $region117: #{light_probe_nn.1} parent=100 // loop_header
                  %s2145 = sphi 0, %s2149
                  %p2146 = scmp.ge.s32.totalorder %s2145, 1
                  %s2150 = sphi %s1963, %s1963
                  %s2151 = sphi %s1965, %s1965
                $region118: #{light_probe_nn.1} parent=100 // loop_header_branch
                  %2148 = sbr.rel (%p2146) target = $region122
                $region119: #{light_probe_nn.1} parent=100 // loop_body
                  %v2152 = vld [vmem:[%s2150] sm:%s2143]
                  %2153 = vst [vmem:[%s2151] sm:%s2143] %v2152
                $region120: #{light_probe_nn.1} parent=100 // loop_footer
                  %s2149 = sadd.s32 1, %s2145
                $region121: #{light_probe_nn.1} parent=100 // loop_footer_branch
                  %2144 = sbr.rel target = $region117
                $region122: #{light_probe_nn.1} parent=100 // loop_exit
                  _
              $region101: #{light_probe_nn.1} parent=67 // pred_fallthru
                _
            $region68: #{light_probe_nn.1} parent=63 // pred_fallthru
              _
            // Predicated region
            $region69: #{light_probe_nn.1} parent=63 // pred_check
              %p1762 = pneg %p1758
            $region70: #{light_probe_nn.1} parent=63 // pred_check_branch
              %1764 = sbr.rel (%p1762) target = $region72
            $region71: #{light_probe_nn.1} parent=63 // pred_region
              %s1765 = sshllo.u32 0, %s1754
              loop: start=0, step=1, limit=1
              $region73: #{light_probe_nn.1} parent=71 // loop_pre_header
                _
              $region74: #{light_probe_nn.1} parent=71 // loop_header
                %s1767 = sphi 0, %s1771
                %p1768 = scmp.ge.s32.totalorder %s1767, 1
                %s1772 = sphi %s1742, %s1742
                %s1773 = sphi %s1753, %s1753
              $region75: #{light_probe_nn.1} parent=71 // loop_header_branch
                %1770 = sbr.rel (%p1768) target = $region79
              $region76: #{light_probe_nn.1} parent=71 // loop_body
                %v1774 = vld [vmem:[%s1772] sm:%s1765]
                %1775 = vst [vmem:[%s1773] sm:%s1765] %v1774
              $region77: #{light_probe_nn.1} parent=71 // loop_footer
                %s1771 = sadd.s32 1, %s1767
              $region78: #{light_probe_nn.1} parent=71 // loop_footer_branch
                %1766 = sbr.rel target = $region74
              $region79: #{light_probe_nn.1} parent=71 // loop_exit
                _
            $region72: #{light_probe_nn.1} parent=63 // pred_fallthru
              _
          $region64: #{light_probe_nn.1} parent=59 // pred_fallthru
            _
          %2154 = vnop
        $region60: #{light_probe_nn.1} parent=55 // pred_fallthru
          _
      $region56: #{light_probe_nn.1} parent=5 // pred_fallthru
        _
      %p2155 = scmp.le.s32.totalorder 2, %s15
      // Predicated region
      $region123: #{light_probe_nn.1} parent=5 // pred_check
        %p2156 = pneg %p2155
      $region124: #{light_probe_nn.1} parent=5 // pred_check_branch
        %2158 = sbr.rel (%p2156) target = $region126
      $region125: #{light_probe_nn.1} parent=5 // pred_region
        %s2159 = ssub.s32 %s15, 2
        // Predicated region
        $region127: #{light_probe_nn.1} parent=125 // pred_check
          %p2160 = pneg %p238
        $region128: #{light_probe_nn.1} parent=125 // pred_check_branch
          %2162 = sbr.rel (%p2160) target = $region130
        $region129: #{light_probe_nn.1} parent=125 // pred_region
          %s2163 = sand.u32 %s223, 1
          %s2164 = sand.u32 %s223, 1
          %s2165 = smul.addr %s2164, 16
          %s2166 = scalar_lea.vmem [#allocation2], %s2165
        $region130: #{light_probe_nn.1} parent=125 // pred_fallthru
          _
      $region126: #{light_probe_nn.1} parent=5 // pred_fallthru
        _
    $region6: #{light_probe_nn.1} parent=1 // loop_footer
      %s19 = sadd.s32 1, %s15
    $region7: #{light_probe_nn.1} parent=1 // loop_footer_branch
      %14 = sbr.rel target = $region3
    $region8: #{light_probe_nn.1} parent=1 // loop_exit
      _

</llo_original>
